<compile_context>
chip_gen: v5e
topology: v5e:2x2
jax: 0.10.0
libtpu: 0.0.40
codegen_flags: <defaults>
</compile_context>

<pallas_src>
import math
import functools

import jax
import jax.numpy as jnp
import numpy as np
from jax import lax
from jax.experimental import pallas as pl
from jax.experimental.pallas import tpu as pltpu


# ----------------------------- helpers ------------------------------------- #

def _round_up(x, m):
    return ((x + m - 1) // m) * m


def _pick_batch_chunks(batch):
    """Split the batch into 2 chunks (v7x megacore) when each chunk stays a
    multiple of 8 sublanes; otherwise keep a single chunk."""
    if batch % 16 == 0:
        return 2, batch // 2
    return 1, batch


def _pick_time_chunk(seq_len, batch_chunk, hidden_dim, budget_bytes=6 << 20):
    """Largest time chunk whose per-chunk activation buffers fit the VMEM budget.

    Returns either the full sequence (no chunking) or a divisor of T that is a
    multiple of 8 (keeps every BlockSpec (8,128)-compliant)."""
    per_step = batch_chunk * hidden_dim * 4 * 10   # x, ybuf, xw(4H), y-out + dbl-buffering
    cap = max(1, budget_bytes // max(per_step, 1))
    if seq_len <= cap:
        return seq_len
    for tc in range(min(seq_len, cap), 0, -1):
        if seq_len % tc == 0 and tc % 8 == 0:
            return tc
    return seq_len


def _lstm_vmem_limit(num_layers, chunk_t, batch_chunk, hidden_dim, mxu_bytes):
    """Scoped-VMEM limit sized from the actual resident buffers (with 2x headroom)."""
    L, Tc, Bc, H, f32 = num_layers, chunk_t, batch_chunk, hidden_dim, 4
    est = 0
    est += 2 * Tc * Bc * H * mxu_bytes            # x chunk (double buffered)
    est += 2 * 2 * L * H * 4 * H * mxu_bytes      # w_ih + w_hh
    est += 2 * L * 4 * H * f32                    # bias
    est += 2 * 2 * L * Bc * H * f32               # h0, c0
    est += 2 * Bc * Tc * H * f32                  # y chunk out (double buffered)
    est += 2 * 2 * L * Bc * H * f32               # h_n, c_n
    est += 2 * L * Bc * H * f32                   # h/c carry scratch
    est += Tc * Bc * 4 * H * f32                  # hoisted x@W_ih scratch
    est += Tc * Bc * H * f32                      # inter-layer chunk buffer
    return int(min(64 << 20, max(16 << 20, 2 * est)))


# ----------------------------- Pallas kernels ------------------------------ #

def _lstm_kernel(x_ref, wih_ref, whh_ref, b_ref, h0_ref, c0_ref,
                 y_ref, h_out_ref, c_out_ref,
                 h_carry, c_carry, xw_ref, ybuf_ref,
                 *, num_layers, hidden_dim, chunk_t, batch_chunk, unroll):
    """Multi-layer LSTM recurrence over one (batch-chunk, time-chunk) grid cell.

    x_ref    : (Tc*Bc, H)  embedded inputs, row = t*Bc + b      (mxu dtype)
    wih_ref  : (L, H, 4H)  input->gates weights                 (mxu dtype)
    whh_ref  : (L, H, 4H)  hidden->gates weights                (mxu dtype)
    b_ref    : (L, 1, 4H)  combined bias b_ih + b_hh            (f32)
    h0_ref   : (L, Bc, H)  initial hidden state for this batch chunk
    c0_ref   : (L, Bc, H)  initial cell state for this batch chunk
    y_ref    : (Bc, Tc, H) OUT: last-layer hidden, batch-major (transpose fused here)
    h_out_ref: (L, Bc, H)  OUT: final hidden state per layer
    c_out_ref: (L, Bc, H)  OUT: final cell state per layer
    h_carry  : (L, Bc, H)  VMEM scratch, persists across time chunks
    c_carry  : (L, Bc, H)  VMEM scratch, persists across time chunks
    xw_ref   : (Tc*Bc,4H)  VMEM scratch: hoisted x @ W_ih + b for the current layer
    ybuf_ref : (Tc*Bc, H)  VMEM scratch: time-major inter-layer chunk buffer

    PyTorch gate order along the 4H axis: [i, f, g, o].
    """
    H, Tc, Bc = hidden_dim, chunk_t, batch_chunk
    mxu_dtype = wih_ref.dtype

    # Per-lane activation constants over the 4H gate axis: sigmoid lanes (i,f,o) use
    # a=0.5, b=0.5; tanh lanes (g) use a=1, b=0, so act = a*tanh(a*x) + b gives
    # sigmoid(x) or tanh(x).  One EUP push covers all four gates.  (Hoisted: built once.)
    col = lax.broadcasted_iota(jnp.int32, (1, 4 * H), 1)
    is_g = jnp.logical_and(col >= 2 * H, col < 3 * H)
    g_a = jnp.where(is_g, 1.0, 0.5).astype(jnp.float32)
    g_b = jnp.where(is_g, 0.0, 0.5).astype(jnp.float32)

    # First time chunk of this batch chunk: load initial state into the carry scratch.
    @pl.when(pl.program_id(1) == 0)
    def _():
        h_carry[...] = h0_ref[...]
        c_carry[...] = c0_ref[...]

    for layer in range(num_layers):                    # static python loop (small L)
        wih = wih_ref[layer]                           # (H, 4H)  mxu dtype
        whh = whh_ref[layer]                           # (H, 4H)  mxu dtype
        bias = b_ref[layer]                            # (1, 4H)  f32

        # ---- hoisted input->gates matmul for the whole chunk (bias folded in). ---
        # ybuf_ref holds the previous layer's chunk; it is read IN FULL here before
        # the recurrence below overwrites it with this layer's outputs.
        xin = x_ref[...] if layer == 0 else ybuf_ref[...].astype(mxu_dtype)
        xw_ref[...] = (jnp.dot(xin, wih, preferred_element_type=jnp.float32) + bias)

        # ---- serial recurrence: only h @ W_hh remains inside the time loop. ------
        def step(t, carry, _whh=whh):
            h, c = carry                               # (Bc, H) f32 each
            row = pl.multiple_of(t * Bc, Bc)
            gates = xw_ref[pl.ds(row, Bc), :] + jnp.dot(
                h.astype(mxu_dtype), _whh, preferred_element_type=jnp.float32)
            act = g_a * jnp.tanh(g_a * gates) + g_b    # fused sigmoid/tanh (1 EUP push)
            i_g = act[:, 0:H]
            f_g = act[:, H:2 * H]
            g_g = act[:, 2 * H:3 * H]
            o_g = act[:, 3 * H:4 * H]
            c_new = f_g * c + i_g * g_g
            h_new = o_g * jnp.tanh(c_new)
            ybuf_ref[pl.ds(row, Bc), :] = h_new
            return (h_new, c_new)

        h_fin, c_fin = lax.fori_loop(0, Tc, step,
                                     (h_carry[layer], c_carry[layer]),
                                     unroll=unroll)
        h_carry[layer] = h_fin
        c_carry[layer] = c_fin

    # Batch-major writeback of the last layer's chunk: fuses the (T,B)->(B,T) transpose
    # into the kernel (static strided sublane reads), so no standalone XLA transpose
    # pass over the hidden activations is needed before the vocab head.
    for b in range(Bc):
        y_ref[b] = ybuf_ref[pl.ds(b, Tc, stride=Bc), :]

    h_out_ref[...] = h_carry[...]
    c_out_ref[...] = c_carry[...]


def _fc_kernel(h_ref, w_ref, b_ref, o_ref):
    """Tied output projection tile: (tm, H) x (tv, H)^T + (1, tv) -> (tm, tv).

    The weight block is the tied embedding rows consumed via a transposed contraction
    (emb.T is never materialised); the hidden tile is cast to the MXU operand dtype
    in-kernel (no standalone XLA cast pass)."""
    h = h_ref[...].astype(w_ref.dtype)
    o_ref[...] = lax.dot_general(
        h, w_ref[...],
        dimension_numbers=(((1,), (1,)), ((), ())),
        preferred_element_type=jnp.float32) + b_ref[...]


# ------------------------------- wrapper ----------------------------------- #

def lstm_lm_forward(indices, params, state, *, mxu_dtype=jnp.float32):
    """Forward pass matching LSTMLanguageModel.forward (eval mode).

    indices  : (B, T) int32
    state    : (h0, c0), each (L, B, H) float32
    mxu_dtype: dtype of MXU matmul operands (jnp.float32 or jnp.bfloat16; bf16 runs at
               full MXU rate on v5e/v6e/v7x).  Accumulation and elementwise math stay f32.
    returns  : logits (B, T, V) f32, (h_n, c_n) each (L, B, H) f32
    """
    emb = params["embedding"]                          # (V, H), tied fc weight
    V, H = emb.shape
    L = params["w_ih"].shape[0]
    B, T = indices.shape
    h0, c0 = state

    emb_mxu = emb.astype(mxu_dtype)
    wih_mxu = params["w_ih"].astype(mxu_dtype)
    whh_mxu = params["w_hh"].astype(mxu_dtype)
    mxu_bytes = jnp.dtype(mxu_dtype).itemsize

    NB, Bc = _pick_batch_chunks(B)                     # batch chunks ("parallel" axis)
    Tc = _pick_time_chunk(T, Bc, H)                    # time chunk ("arbitrary" axis)
    NT = T // Tc
    unroll = min(Tc, 8)

    # Embedding lookup (gather) - plain JAX glue. Reordering the tiny (B, T) index array
    # yields rows grouped (batch-chunk, time, batch-in-chunk), i.e. the flattened
    # time-major layout each grid block wants, for free.  Dropout: identity (eval mode).
    idx_tm = jnp.transpose(indices.reshape(NB, Bc, T), (0, 2, 1)).reshape(-1)
    x_flat = jnp.take(emb_mxu, idx_tm, axis=0)         # (B*T, H)

    kernel = functools.partial(_lstm_kernel, num_layers=L, hidden_dim=H,
                               chunk_t=Tc, batch_chunk=Bc, unroll=unroll)

    y_bm, h_n, c_n = pl.pallas_call(
        kernel,
        out_shape=(jax.ShapeDtypeStruct((B, T, H), jnp.float32),
                   jax.ShapeDtypeStruct((L, B, H), jnp.float32),
                   jax.ShapeDtypeStruct((L, B, H), jnp.float32)),
        grid=(NB, NT),
        in_specs=[
            pl.BlockSpec((Tc * Bc, H), lambda bi, ti: (bi * NT + ti, 0)),   # x chunk
            pl.BlockSpec((L, H, 4 * H), lambda bi, ti: (0, 0, 0)),          # W_ih
            pl.BlockSpec((L, H, 4 * H), lambda bi, ti: (0, 0, 0)),          # W_hh
            pl.BlockSpec((L, 1, 4 * H), lambda bi, ti: (0, 0, 0)),          # bias
            pl.BlockSpec((L, Bc, H), lambda bi, ti: (0, bi, 0)),            # h0
            pl.BlockSpec((L, Bc, H), lambda bi, ti: (0, bi, 0)),            # c0
        ],
        out_specs=(
            pl.BlockSpec((Bc, Tc, H), lambda bi, ti: (bi, ti, 0)),          # hidden (B,T,H)
            pl.BlockSpec((L, Bc, H), lambda bi, ti: (0, bi, 0)),            # h_n
            pl.BlockSpec((L, Bc, H), lambda bi, ti: (0, bi, 0)),            # c_n
        ),
        scratch_shapes=[
            pltpu.VMEM((L, Bc, H), jnp.float32),        # h carry (persists over chunks)
            pltpu.VMEM((L, Bc, H), jnp.float32),        # c carry
            pltpu.VMEM((Tc * Bc, 4 * H), jnp.float32),  # hoisted x@W_ih + b (per chunk)
            pltpu.VMEM((Tc * Bc, H), jnp.float32),      # inter-layer chunk buffer
        ],
        compiler_params=pltpu.CompilerParams(
            dimension_semantics=("parallel", "arbitrary"),
            vmem_limit_bytes=_lstm_vmem_limit(L, Tc, Bc, H, mxu_bytes)),
    )(x_flat, wih_mxu, whh_mxu, params["bias"], h0, c0)

    # ---- tied vocab projection: vocab-outer grid, lane-dense (8,128)-aligned tiles ---
    BT = B * T
    hidden = y_bm.reshape(BT, H)                       # free reshape (already batch-major)
    tm = min(256, _round_up(BT, 8))
    tv = min(512, _round_up(V, 128))
    BT_pad = _round_up(BT, tm)
    V_pad = _round_up(V, tv)

    if BT_pad != BT:
        hidden = jnp.pad(hidden, ((0, BT_pad - BT), (0, 0)))
    emb_fc = emb_mxu
    fc_bias = params["fc_bias"].astype(jnp.float32).reshape(1, V)
    if V_pad != V:
        emb_fc = jnp.pad(emb_fc, ((0, V_pad - V), (0, 0)))
        fc_bias = jnp.pad(fc_bias, ((0, 0), (0, V_pad - V)))

    logits = pl.pallas_call(
        _fc_kernel,
        out_shape=jax.ShapeDtypeStruct((BT_pad, V_pad), jnp.float32),
        grid=(V_pad // tv, BT_pad // tm),              # vocab OUTER: embedding streamed once
        in_specs=[pl.BlockSpec((tm, H), lambda j, i: (i, 0)),
                  pl.BlockSpec((tv, H), lambda j, i: (j, 0)),
                  pl.BlockSpec((1, tv), lambda j, i: (0, j))],
        out_specs=pl.BlockSpec((tm, tv), lambda j, i: (i, j)),
        compiler_params=pltpu.CompilerParams(
            dimension_semantics=("parallel", "parallel")),
    )(hidden, emb_fc, fc_bias)

    if BT_pad != BT or V_pad != V:
        logits = logits[:BT, :V]

    return logits.reshape(B, T, V), (h_n, c_n)


# -------------------------- parameter construction ------------------------- #

def init_params(key, vocab_size, num_layers, hidden_dim):
    """Deterministic init mirroring the PyTorch module's parameter shapes.

    embedding ~ N(0, 1/sqrt(H)); LSTM weights/biases ~ U(-k, k), k = 1/sqrt(H);
    fc.weight is tied to embedding.weight; fc.bias ~ U(-k, k)."""
    k = 1.0 / math.sqrt(hidden_dim)
    keys = jax.random.split(key, 2 + 4 * num_layers)
    emb = jax.random.normal(keys[0], (vocab_size, hidden_dim), jnp.float32) * k

    w_ih, w_hh, bias = [], [], []
    for l in range(num_layers):
        wi = jax.random.uniform(keys[2 + 4 * l], (4 * hidden_dim, hidden_dim),
                                jnp.float32, -k, k)
        wh = jax.random.uniform(keys[3 + 4 * l], (4 * hidden_dim, hidden_dim),
                                jnp.float32, -k, k)
        bi = jax.random.uniform(keys[4 + 4 * l], (4 * hidden_dim,),
                                jnp.float32, -k, k)
        bh = jax.random.uniform(keys[5 + 4 * l], (4 * hidden_dim,),
                                jnp.float32, -k, k)
        w_ih.append(wi.T)                              # (H, 4H)
        w_hh.append(wh.T)                              # (H, 4H)
        bias.append((bi + bh).reshape(1, 4 * hidden_dim))

    fc_bias = jax.random.uniform(keys[1], (vocab_size,), jnp.float32, -k, k)

    return {
        "embedding": emb,                              # (V, H)  (tied fc weight)
        "w_ih": jnp.stack(w_ih),                       # (L, H, 4H)
        "w_hh": jnp.stack(w_hh),                       # (L, H, 4H)
        "bias": jnp.stack(bias),                       # (L, 1, 4H)
        "fc_bias": fc_bias,                            # (V,)
    }


# ---------------------------- pure-JAX reference ---------------------------- #

def _reference_forward(indices, params, state):
    emb = params["embedding"]
    H = emb.shape[1]
    L = params["w_ih"].shape[0]
    x = jnp.take(emb, indices, axis=0)                 # (B, T, H)
    h0, c0 = state
    h_n, c_n = [], []
    layer_in = x
    for l in range(L):
        wih, whh, b = params["w_ih"][l], params["w_hh"][l], params["bias"][l]

        def step(carry, xt):
            h, c = carry
            g = xt @ wih + h @ whh + b
            i = jax.nn.sigmoid(g[:, 0:H])
            f = jax.nn.sigmoid(g[:, H:2 * H])
            gg = jnp.tanh(g[:, 2 * H:3 * H])
            o = jax.nn.sigmoid(g[:, 3 * H:4 * H])
            c2 = f * c + i * gg
            h2 = o * jnp.tanh(c2)
            return (h2, c2), h2

        (hf, cf), ys = lax.scan(step, (h0[l], c0[l]),
                                jnp.transpose(layer_in, (1, 0, 2)))
        layer_in = jnp.transpose(ys, (1, 0, 2))
        h_n.append(hf)
        c_n.append(cf)
    logits = layer_in @ emb.T + params["fc_bias"]
    return logits, (jnp.stack(h_n), jnp.stack(c_n))


# ----------------------------------- main ----------------------------------- #

if __name__ == "__main__":
    VOCAB, LAYERS, HIDDEN = 256, 2, 32
    B, T = 2, 8

    root = jax.random.PRNGKey(0)
    k_param, k_idx = jax.random.split(root)
    params = init_params(k_param, VOCAB, LAYERS, HIDDEN)

    indices = jax.random.randint(k_idx, (B, T), 0, VOCAB, dtype=jnp.int32)
    state = (jnp.zeros((LAYERS, B, HIDDEN), jnp.float32),
             jnp.zeros((LAYERS, B, HIDDEN), jnp.float32))

    ref_logits, (ref_h, ref_c) = _reference_forward(indices, params, state)

    # --- f32 MXU-operand path: tight correctness check ---------------------- #
    fwd_f32 = jax.jit(functools.partial(lstm_lm_forward, mxu_dtype=jnp.float32))
    logits, (h_n, c_n) = fwd_f32(indices, params, state)
    jax.block_until_ready((logits, h_n, c_n))
    assert logits.shape == (B, T, VOCAB)
    assert h_n.shape == (LAYERS, B, HIDDEN) and c_n.shape == (LAYERS, B, HIDDEN)
    np.testing.assert_allclose(np.asarray(logits), np.asarray(ref_logits),
                               rtol=1e-4, atol=1e-4)
    np.testing.assert_allclose(np.asarray(h_n), np.asarray(ref_h),
                               rtol=1e-4, atol=1e-4)
    np.testing.assert_allclose(np.asarray(c_n), np.asarray(ref_c),
                               rtol=1e-4, atol=1e-4)

    # --- bf16 MXU-operand path (full MXU rate on v5e/v6e/v7x): loose check --- #
    fwd_bf16 = jax.jit(functools.partial(lstm_lm_forward, mxu_dtype=jnp.bfloat16))
    logits_bf, (h_bf, c_bf) = fwd_bf16(indices, params, state)
    jax.block_until_ready((logits_bf, h_bf, c_bf))
    np.testing.assert_allclose(np.asarray(logits_bf), np.asarray(ref_logits),
                               rtol=1e-1, atol=1e-1)
    np.testing.assert_allclose(np.asarray(h_bf), np.asarray(ref_h),
                               rtol=1e-1, atol=1e-1)
    np.testing.assert_allclose(np.asarray(c_bf), np.asarray(ref_c),
                               rtol=1e-1, atol=1e-1)

    print("KERNEL_OK")
</pallas_src>

<mosaic_0001>
module attributes {stable_mosaic.version = 11 : i64} {
  func.func @_fc_kernel(%arg0: i32, %arg1: i32, %arg2: memref<16x32xf32, #tpu.memory_space<vmem>>, %arg3: memref<256x32xf32, #tpu.memory_space<vmem>>, %arg4: memref<1x256xf32, #tpu.memory_space<vmem>>, %arg5: memref<16x256xf32, #tpu.memory_space<vmem>>) attributes {dimension_semantics = [#tpu.dimension_semantics<parallel>, #tpu.dimension_semantics<parallel>], iteration_bounds = array<i64: 1, 1>, scalar_prefetch = 0 : i64, scratch_operands = 0 : i64, tpu.core_type = #tpu.core_type<tc>, window_params = [{transform_indices = @transform_0, window_bounds = array<i64: 16, 32>}, {transform_indices = @transform_1, window_bounds = array<i64: 256, 32>}, {transform_indices = @transform_2, window_bounds = array<i64: 1, 256>}, {transform_indices = @transform_3, window_bounds = array<i64: 16, 256>}]} {
    %c0 = arith.constant 0 : index
    %c0_0 = arith.constant 0 : index
    %0 = vector.load %arg2[%c0, %c0_0] : memref<16x32xf32, #tpu.memory_space<vmem>>, vector<16x32xf32>
    %c0_1 = arith.constant 0 : index
    %c0_2 = arith.constant 0 : index
    %1 = vector.load %arg3[%c0_1, %c0_2] : memref<256x32xf32, #tpu.memory_space<vmem>>, vector<256x32xf32>
    %cst = arith.constant dense<0.000000e+00> : vector<16x256xf32>
    %2 = tpu.matmul %0, %1, %cst {dimension_numbers = #tpu.dot_dimension_numbers<[1], [1], [0], [0], [0, 0, 1, 0], [], []>} : vector<16x32xf32>, vector<256x32xf32>, vector<16x256xf32> -> vector<16x256xf32>
    %c0_3 = arith.constant 0 : index
    %c0_4 = arith.constant 0 : index
    %3 = vector.load %arg4[%c0_3, %c0_4] : memref<1x256xf32, #tpu.memory_space<vmem>>, vector<1x256xf32>
    %4 = vector.broadcast %3 : vector<1x256xf32> to vector<16x256xf32>
    %5 = arith.addf %2, %4 : vector<16x256xf32>
    %c0_5 = arith.constant 0 : index
    %c0_6 = arith.constant 0 : index
    %6 = vector.load %arg5[%c0_5, %c0_6] : memref<16x256xf32, #tpu.memory_space<vmem>>, vector<16x256xf32>
    tpu.vector_store %arg5[%c0_5, %c0_6], %5 {strides = array<i32>} : memref<16x256xf32, #tpu.memory_space<vmem>>, vector<16x256xf32>,
    return
  }
  func.func @transform_0(%arg0: i32, %arg1: i32) -> (i32, i32) {
    %c0_i32 = arith.constant 0 : i32
    %c0_i32_0 = arith.constant 0 : i32
    return %arg1, %c0_i32 : i32, i32
  }
  func.func @transform_1(%arg0: i32, %arg1: i32) -> (i32, i32) {
    %c0_i32 = arith.constant 0 : i32
    %c0_i32_0 = arith.constant 0 : i32
    return %arg0, %c0_i32 : i32, i32
  }
  func.func @transform_2(%arg0: i32, %arg1: i32) -> (i32, i32) {
    %c0_i32 = arith.constant 0 : i32
    %c0_i32_0 = arith.constant 0 : i32
    return %c0_i32, %arg0 : i32, i32
  }
  func.func @transform_3(%arg0: i32, %arg1: i32) -> (i32, i32) {
    %c0_i32 = arith.constant 0 : i32
    return %arg1, %arg0 : i32, i32
  }
}

module attributes {stable_mosaic.version = 11 : i64} {
  func.func @_lstm_kernel(%arg0: i32, %arg1: i32, %arg2: memref<16x32xf32, #tpu.memory_space<vmem>>, %arg3: memref<2x32x128xf32, #tpu.memory_space<vmem>>, %arg4: memref<2x32x128xf32, #tpu.memory_space<vmem>>, %arg5: memref<2x1x128xf32, #tpu.memory_space<vmem>>, %arg6: memref<2x2x32xf32, #tpu.memory_space<vmem>>, %arg7: memref<2x2x32xf32, #tpu.memory_space<vmem>>, %arg8: memref<2x8x32xf32, #tpu.memory_space<vmem>>, %arg9: memref<2x2x32xf32, #tpu.memory_space<vmem>>, %arg10: memref<2x2x32xf32, #tpu.memory_space<vmem>>, %arg11: memref<2x2x32xf32, #tpu.memory_space<vmem>>, %arg12: memref<2x2x32xf32, #tpu.memory_space<vmem>>, %arg13: memref<16x128xf32, #tpu.memory_space<vmem>>, %arg14: memref<16x32xf32, #tpu.memory_space<vmem>>) attributes {dimension_semantics = [#tpu.dimension_semantics<parallel>, #tpu.dimension_semantics<arbitrary>], iteration_bounds = array<i64: 1, 1>, scalar_prefetch = 0 : i64, scratch_operands = 4 : i64, tpu.core_type = #tpu.core_type<tc>, window_params = [{transform_indices = @transform_0, window_bounds = array<i64: 16, 32>}, {pipeline_mode = #tpu.pipeline_mode<synchronous>, transform_indices = @transform_1, window_bounds = array<i64: 2, 32, 128>}, {pipeline_mode = #tpu.pipeline_mode<synchronous>, transform_indices = @transform_2, window_bounds = array<i64: 2, 32, 128>}, {pipeline_mode = #tpu.pipeline_mode<synchronous>, transform_indices = @transform_3, window_bounds = array<i64: 2, 1, 128>}, {transform_indices = @transform_4, window_bounds = array<i64: 2, 2, 32>}, {transform_indices = @transform_5, window_bounds = array<i64: 2, 2, 32>}, {transform_indices = @transform_6, window_bounds = array<i64: 2, 8, 32>}, {transform_indices = @transform_7, window_bounds = array<i64: 2, 2, 32>}, {transform_indices = @transform_8, window_bounds = array<i64: 2, 2, 32>}]} {
    %0 = tpu.iota {dimensions = array<i32: 1>} : vector<1x128xi32>
    %c64_i32 = arith.constant 64 : i32
    %1 = vector.broadcast %c64_i32 : i32 to vector<1x128xi32>
    %2 = arith.cmpi sge, %0, %1 : vector<1x128xi32>
    %c96_i32 = arith.constant 96 : i32
    %3 = vector.broadcast %c96_i32 : i32 to vector<1x128xi32>
    %4 = arith.cmpi slt, %0, %3 : vector<1x128xi32>
    %5 = arith.andi %2, %4 : vector<1x128xi1>
    %cst = arith.constant 1.000000e+00 : f32
    %cst_0 = arith.constant 5.000000e-01 : f32
    %6 = vector.broadcast %cst : f32 to vector<1x128xf32>
    %7 = vector.broadcast %cst_0 : f32 to vector<1x128xf32>
    %8 = arith.select %5, %6, %7 : vector<1x128xi1>, vector<1x128xf32>
    %cst_1 = arith.constant 0.000000e+00 : f32
    %cst_2 = arith.constant 5.000000e-01 : f32
    %9 = vector.broadcast %cst_1 : f32 to vector<1x128xf32>
    %10 = vector.broadcast %cst_2 : f32 to vector<1x128xf32>
    %11 = arith.select %5, %9, %10 : vector<1x128xi1>, vector<1x128xf32>
    %c0_i32 = arith.constant 0 : i32
    %12 = arith.cmpi eq, %arg1, %c0_i32 : i32
    %13 = arith.extui %12 : i1 to i32
    %c0_i32_3 = arith.constant 0 : i32
    %14 = arith.cmpi ne, %13, %c0_i32_3 : i32
    scf.if %14 {
      %c0_150 = arith.constant 0 : index
      %c0_151 = arith.constant 0 : index
      %c0_152 = arith.constant 0 : index
      %453 = vector.load %arg6[%c0_150, %c0_151, %c0_152] : memref<2x2x32xf32, #tpu.memory_space<vmem>>, vector<2x2x32xf32>
      %c0_153 = arith.constant 0 : index
      %c0_154 = arith.constant 0 : index
      %c0_155 = arith.constant 0 : index
      %454 = vector.load %arg11[%c0_153, %c0_154, %c0_155] : memref<2x2x32xf32, #tpu.memory_space<vmem>>, vector<2x2x32xf32>
      tpu.vector_store %arg11[%c0_153, %c0_154, %c0_155], %453 {strides = array<i32>} : memref<2x2x32xf32, #tpu.memory_space<vmem>>, vector<2x2x32xf32>,
      %c0_156 = arith.constant 0 : index
      %c0_157 = arith.constant 0 : index
      %c0_158 = arith.constant 0 : index
      %455 = vector.load %arg7[%c0_156, %c0_157, %c0_158] : memref<2x2x32xf32, #tpu.memory_space<vmem>>, vector<2x2x32xf32>
      %c0_159 = arith.constant 0 : index
      %c0_160 = arith.constant 0 : index
      %c0_161 = arith.constant 0 : index
      %456 = vector.load %arg12[%c0_159, %c0_160, %c0_161] : memref<2x2x32xf32, #tpu.memory_space<vmem>>, vector<2x2x32xf32>
      tpu.vector_store %arg12[%c0_159, %c0_160, %c0_161], %455 {strides = array<i32>} : memref<2x2x32xf32, #tpu.memory_space<vmem>>, vector<2x2x32xf32>,
    } else {
    }
    %c0 = arith.constant 0 : index
    %c0_4 = arith.constant 0 : index
    %c0_5 = arith.constant 0 : index
    %15 = vector.load %arg3[%c0, %c0_4, %c0_5] : memref<2x32x128xf32, #tpu.memory_space<vmem>>, vector<1x32x128xf32>
    %16 = vector.shape_cast %15 : vector<1x32x128xf32> to vector<32x128xf32>
    %c0_6 = arith.constant 0 : index
    %c0_7 = arith.constant 0 : index
    %c0_8 = arith.constant 0 : index
    %17 = vector.load %arg4[%c0_6, %c0_7, %c0_8] : memref<2x32x128xf32, #tpu.memory_space<vmem>>, vector<1x32x128xf32>
    %18 = vector.shape_cast %17 : vector<1x32x128xf32> to vector<32x128xf32>
    %c0_9 = arith.constant 0 : index
    %c0_10 = arith.constant 0 : index
    %c0_11 = arith.constant 0 : index
    %19 = vector.load %arg5[%c0_9, %c0_10, %c0_11] : memref<2x1x128xf32, #tpu.memory_space<vmem>>, vector<1x1x128xf32>
    %20 = vector.shape_cast %19 : vector<1x1x128xf32> to vector<1x128xf32>
    %c0_12 = arith.constant 0 : index
    %c0_13 = arith.constant 0 : index
    %21 = vector.load %arg2[%c0_12, %c0_13] : memref<16x32xf32, #tpu.memory_space<vmem>>, vector<16x32xf32>
    %cst_14 = arith.constant dense<0.000000e+00> : vector<16x128xf32>
    %22 = tpu.matmul %21, %16, %cst_14 {dimension_numbers = #tpu.dot_dimension_numbers<[1], [0], [0], [1], [0, 0, 1, 1], [], []>} : vector<16x32xf32>, vector<32x128xf32>, vector<16x128xf32> -> vector<16x128xf32>
    %23 = vector.broadcast %20 : vector<1x128xf32> to vector<16x128xf32>
    %24 = arith.addf %22, %23 : vector<16x128xf32>
    %c0_15 = arith.constant 0 : index
    %c0_16 = arith.constant 0 : index
    %25 = vector.load %arg13[%c0_15, %c0_16] : memref<16x128xf32, #tpu.memory_space<vmem>>, vector<16x128xf32>
    tpu.vector_store %arg13[%c0_15, %c0_16], %24 {strides = array<i32>} : memref<16x128xf32, #tpu.memory_space<vmem>>, vector<16x128xf32>,
    %c0_17 = arith.constant 0 : index
    %c0_18 = arith.constant 0 : index
    %c0_19 = arith.constant 0 : index
    %26 = vector.load %arg11[%c0_17, %c0_18, %c0_19] : memref<2x2x32xf32, #tpu.memory_space<vmem>>, vector<1x2x32xf32>
    %27 = vector.shape_cast %26 : vector<1x2x32xf32> to vector<2x32xf32>
    %c0_20 = arith.constant 0 : index
    %c0_21 = arith.constant 0 : index
    %c0_22 = arith.constant 0 : index
    %28 = vector.load %arg12[%c0_20, %c0_21, %c0_22] : memref<2x2x32xf32, #tpu.memory_space<vmem>>, vector<1x2x32xf32>
    %29 = vector.shape_cast %28 : vector<1x2x32xf32> to vector<2x32xf32>
    %c0_i32_23 = arith.constant 0 : i32
    %c2_i32 = arith.constant 2 : i32
    %30 = arith.muli %c0_i32_23, %c2_i32 : i32
    %31 = tpu.assume_multiple %30, 2 : i32
    %32 = arith.index_cast %31 : i32 to index
    %c0_24 = arith.constant 0 : index
    %33 = vector.load %arg13[%32, %c0_24] : memref<16x128xf32, #tpu.memory_space<vmem>>, vector<2x128xf32>
    %cst_25 = arith.constant dense<0.000000e+00> : vector<2x128xf32>
    %34 = tpu.matmul %27, %18, %cst_25 {dimension_numbers = #tpu.dot_dimension_numbers<[1], [0], [0], [1], [0, 0, 1, 1], [], []>} : vector<2x32xf32>, vector<32x128xf32>, vector<2x128xf32> -> vector<2x128xf32>
    %35 = arith.addf %33, %34 : vector<2x128xf32>
    %36 = vector.broadcast %8 : vector<1x128xf32> to vector<2x128xf32>
    %37 = arith.mulf %36, %35 : vector<2x128xf32>
    %38 = math.tanh %37 : vector<2x128xf32>
    %39 = vector.broadcast %8 : vector<1x128xf32> to vector<2x128xf32>
    %40 = arith.mulf %39, %38 : vector<2x128xf32>
    %41 = vector.broadcast %11 : vector<1x128xf32> to vector<2x128xf32>
    %42 = arith.addf %40, %41 : vector<2x128xf32>
    %43 = vector.extract_strided_slice %42 {offsets = [0, 0], sizes = [2, 32], strides = [1, 1]} : vector<2x128xf32> to vector<2x32xf32>
    %44 = vector.extract_strided_slice %42 {offsets = [0, 32], sizes = [2, 32], strides = [1, 1]} : vector<2x128xf32> to vector<2x32xf32>
    %45 = vector.extract_strided_slice %42 {offsets = [0, 64], sizes = [2, 32], strides = [1, 1]} : vector<2x128xf32> to vector<2x32xf32>
    %46 = vector.extract_strided_slice %42 {offsets = [0, 96], sizes = [2, 32], strides = [1, 1]} : vector<2x128xf32> to vector<2x32xf32>
    %47 = arith.mulf %44, %29 : vector<2x32xf32>
    %48 = arith.mulf %43, %45 : vector<2x32xf32>
    %49 = arith.addf %47, %48 : vector<2x32xf32>
    %50 = math.tanh %49 : vector<2x32xf32>
    %51 = arith.mulf %46, %50 : vector<2x32xf32>
    %52 = arith.index_cast %31 : i32 to index
    %c0_26 = arith.constant 0 : index
    %53 = vector.load %arg14[%52, %c0_26] : memref<16x32xf32, #tpu.memory_space<vmem>>, vector<2x32xf32>
    tpu.vector_store %arg14[%52, %c0_26], %51 {strides = array<i32>} : memref<16x32xf32, #tpu.memory_space<vmem>>, vector<2x32xf32>,
    %c1_i32 = arith.constant 1 : i32
    %c2_i32_27 = arith.constant 2 : i32
    %54 = arith.muli %c1_i32, %c2_i32_27 : i32
    %55 = tpu.assume_multiple %54, 2 : i32
    %56 = arith.index_cast %55 : i32 to index
    %c0_28 = arith.constant 0 : index
    %57 = vector.load %arg13[%56, %c0_28] : memref<16x128xf32, #tpu.memory_space<vmem>>, vector<2x128xf32>
    %cst_29 = arith.constant dense<0.000000e+00> : vector<2x128xf32>
    %58 = tpu.matmul %51, %18, %cst_29 {dimension_numbers = #tpu.dot_dimension_numbers<[1], [0], [0], [1], [0, 0, 1, 1], [], []>} : vector<2x32xf32>, vector<32x128xf32>, vector<2x128xf32> -> vector<2x128xf32>
    %59 = arith.addf %57, %58 : vector<2x128xf32>
    %60 = vector.broadcast %8 : vector<1x128xf32> to vector<2x128xf32>
    %61 = arith.mulf %60, %59 : vector<2x128xf32>
    %62 = math.tanh %61 : vector<2x128xf32>
    %63 = vector.broadcast %8 : vector<1x128xf32> to vector<2x128xf32>
    %64 = arith.mulf %63, %62 : vector<2x128xf32>
    %65 = vector.broadcast %11 : vector<1x128xf32> to vector<2x128xf32>
    %66 = arith.addf %64, %65 : vector<2x128xf32>
    %67 = vector.extract_strided_slice %66 {offsets = [0, 0], sizes = [2, 32], strides = [1, 1]} : vector<2x128xf32> to vector<2x32xf32>
    %68 = vector.extract_strided_slice %66 {offsets = [0, 32], sizes = [2, 32], strides = [1, 1]} : vector<2x128xf32> to vector<2x32xf32>
    %69 = vector.extract_strided_slice %66 {offsets = [0, 64], sizes = [2, 32], strides = [1, 1]} : vector<2x128xf32> to vector<2x32xf32>
    %70 = vector.extract_strided_slice %66 {offsets = [0, 96], sizes = [2, 32], strides = [1, 1]} : vector<2x128xf32> to vector<2x32xf32>
    %71 = arith.mulf %68, %49 : vector<2x32xf32>
    %72 = arith.mulf %67, %69 : vector<2x32xf32>
    %73 = arith.addf %71, %72 : vector<2x32xf32>
    %74 = math.tanh %73 : vector<2x32xf32>
    %75 = arith.mulf %70, %74 : vector<2x32xf32>
    %76 = arith.index_cast %55 : i32 to index
    %c0_30 = arith.constant 0 : index
    %77 = vector.load %arg14[%76, %c0_30] : memref<16x32xf32, #tpu.memory_space<vmem>>, vector<2x32xf32>
    tpu.vector_store %arg14[%76, %c0_30], %75 {strides = array<i32>} : memref<16x32xf32, #tpu.memory_space<vmem>>, vector<2x32xf32>,
    %c2_i32_31 = arith.constant 2 : i32
    %c2_i32_32 = arith.constant 2 : i32
    %78 = arith.muli %c2_i32_31, %c2_i32_32 : i32
    %79 = tpu.assume_multiple %78, 2 : i32
    %80 = arith.index_cast %79 : i32 to index
    %c0_33 = arith.constant 0 : index
    %81 = vector.load %arg13[%80, %c0_33] : memref<16x128xf32, #tpu.memory_space<vmem>>, vector<2x128xf32>
    %cst_34 = arith.constant dense<0.000000e+00> : vector<2x128xf32>
    %82 = tpu.matmul %75, %18, %cst_34 {dimension_numbers = #tpu.dot_dimension_numbers<[1], [0], [0], [1], [0, 0, 1, 1], [], []>} : vector<2x32xf32>, vector<32x128xf32>, vector<2x128xf32> -> vector<2x128xf32>
    %83 = arith.addf %81, %82 : vector<2x128xf32>
    %84 = vector.broadcast %8 : vector<1x128xf32> to vector<2x128xf32>
    %85 = arith.mulf %84, %83 : vector<2x128xf32>
    %86 = math.tanh %85 : vector<2x128xf32>
    %87 = vector.broadcast %8 : vector<1x128xf32> to vector<2x128xf32>
    %88 = arith.mulf %87, %86 : vector<2x128xf32>
    %89 = vector.broadcast %11 : vector<1x128xf32> to vector<2x128xf32>
    %90 = arith.addf %88, %89 : vector<2x128xf32>
    %91 = vector.extract_strided_slice %90 {offsets = [0, 0], sizes = [2, 32], strides = [1, 1]} : vector<2x128xf32> to vector<2x32xf32>
    %92 = vector.extract_strided_slice %90 {offsets = [0, 32], sizes = [2, 32], strides = [1, 1]} : vector<2x128xf32> to vector<2x32xf32>
    %93 = vector.extract_strided_slice %90 {offsets = [0, 64], sizes = [2, 32], strides = [1, 1]} : vector<2x128xf32> to vector<2x32xf32>
    %94 = vector.extract_strided_slice %90 {offsets = [0, 96], sizes = [2, 32], strides = [1, 1]} : vector<2x128xf32> to vector<2x32xf32>
    %95 = arith.mulf %92, %73 : vector<2x32xf32>
    %96 = arith.mulf %91, %93 : vector<2x32xf32>
    %97 = arith.addf %95, %96 : vector<2x32xf32>
    %98 = math.tanh %97 : vector<2x32xf32>
    %99 = arith.mulf %94, %98 : vector<2x32xf32>
    %100 = arith.index_cast %79 : i32 to index
    %c0_35 = arith.constant 0 : index
    %101 = vector.load %arg14[%100, %c0_35] : memref<16x32xf32, #tpu.memory_space<vmem>>, vector<2x32xf32>
    tpu.vector_store %arg14[%100, %c0_35], %99 {strides = array<i32>} : memref<16x32xf32, #tpu.memory_space<vmem>>, vector<2x32xf32>,
    %c3_i32 = arith.constant 3 : i32
    %c2_i32_36 = arith.constant 2 : i32
    %102 = arith.muli %c3_i32, %c2_i32_36 : i32
    %103 = tpu.assume_multiple %102, 2 : i32
    %104 = arith.index_cast %103 : i32 to index
    %c0_37 = arith.constant 0 : index
    %105 = vector.load %arg13[%104, %c0_37] : memref<16x128xf32, #tpu.memory_space<vmem>>, vector<2x128xf32>
    %cst_38 = arith.constant dense<0.000000e+00> : vector<2x128xf32>
    %106 = tpu.matmul %99, %18, %cst_38 {dimension_numbers = #tpu.dot_dimension_numbers<[1], [0], [0], [1], [0, 0, 1, 1], [], []>} : vector<2x32xf32>, vector<32x128xf32>, vector<2x128xf32> -> vector<2x128xf32>
    %107 = arith.addf %105, %106 : vector<2x128xf32>
    %108 = vector.broadcast %8 : vector<1x128xf32> to vector<2x128xf32>
    %109 = arith.mulf %108, %107 : vector<2x128xf32>
    %110 = math.tanh %109 : vector<2x128xf32>
    %111 = vector.broadcast %8 : vector<1x128xf32> to vector<2x128xf32>
    %112 = arith.mulf %111, %110 : vector<2x128xf32>
    %113 = vector.broadcast %11 : vector<1x128xf32> to vector<2x128xf32>
    %114 = arith.addf %112, %113 : vector<2x128xf32>
    %115 = vector.extract_strided_slice %114 {offsets = [0, 0], sizes = [2, 32], strides = [1, 1]} : vector<2x128xf32> to vector<2x32xf32>
    %116 = vector.extract_strided_slice %114 {offsets = [0, 32], sizes = [2, 32], strides = [1, 1]} : vector<2x128xf32> to vector<2x32xf32>
    %117 = vector.extract_strided_slice %114 {offsets = [0, 64], sizes = [2, 32], strides = [1, 1]} : vector<2x128xf32> to vector<2x32xf32>
    %118 = vector.extract_strided_slice %114 {offsets = [0, 96], sizes = [2, 32], strides = [1, 1]} : vector<2x128xf32> to vector<2x32xf32>
    %119 = arith.mulf %116, %97 : vector<2x32xf32>
    %120 = arith.mulf %115, %117 : vector<2x32xf32>
    %121 = arith.addf %119, %120 : vector<2x32xf32>
    %122 = math.tanh %121 : vector<2x32xf32>
    %123 = arith.mulf %118, %122 : vector<2x32xf32>
    %124 = arith.index_cast %103 : i32 to index
    %c0_39 = arith.constant 0 : index
    %125 = vector.load %arg14[%124, %c0_39] : memref<16x32xf32, #tpu.memory_space<vmem>>, vector<2x32xf32>
    tpu.vector_store %arg14[%124, %c0_39], %123 {strides = array<i32>} : memref<16x32xf32, #tpu.memory_space<vmem>>, vector<2x32xf32>,
    %c4_i32 = arith.constant 4 : i32
    %c2_i32_40 = arith.constant 2 : i32
    %126 = arith.muli %c4_i32, %c2_i32_40 : i32
    %127 = tpu.assume_multiple %126, 2 : i32
    %128 = arith.index_cast %127 : i32 to index
    %c0_41 = arith.constant 0 : index
    %129 = vector.load %arg13[%128, %c0_41] : memref<16x128xf32, #tpu.memory_space<vmem>>, vector<2x128xf32>
    %cst_42 = arith.constant dense<0.000000e+00> : vector<2x128xf32>
    %130 = tpu.matmul %123, %18, %cst_42 {dimension_numbers = #tpu.dot_dimension_numbers<[1], [0], [0], [1], [0, 0, 1, 1], [], []>} : vector<2x32xf32>, vector<32x128xf32>, vector<2x128xf32> -> vector<2x128xf32>
    %131 = arith.addf %129, %130 : vector<2x128xf32>
    %132 = vector.broadcast %8 : vector<1x128xf32> to vector<2x128xf32>
    %133 = arith.mulf %132, %131 : vector<2x128xf32>
    %134 = math.tanh %133 : vector<2x128xf32>
    %135 = vector.broadcast %8 : vector<1x128xf32> to vector<2x128xf32>
    %136 = arith.mulf %135, %134 : vector<2x128xf32>
    %137 = vector.broadcast %11 : vector<1x128xf32> to vector<2x128xf32>
    %138 = arith.addf %136, %137 : vector<2x128xf32>
    %139 = vector.extract_strided_slice %138 {offsets = [0, 0], sizes = [2, 32], strides = [1, 1]} : vector<2x128xf32> to vector<2x32xf32>
    %140 = vector.extract_strided_slice %138 {offsets = [0, 32], sizes = [2, 32], strides = [1, 1]} : vector<2x128xf32> to vector<2x32xf32>
    %141 = vector.extract_strided_slice %138 {offsets = [0, 64], sizes = [2, 32], strides = [1, 1]} : vector<2x128xf32> to vector<2x32xf32>
    %142 = vector.extract_strided_slice %138 {offsets = [0, 96], sizes = [2, 32], strides = [1, 1]} : vector<2x128xf32> to vector<2x32xf32>
    %143 = arith.mulf %140, %121 : vector<2x32xf32>
    %144 = arith.mulf %139, %141 : vector<2x32xf32>
    %145 = arith.addf %143, %144 : vector<2x32xf32>
    %146 = math.tanh %145 : vector<2x32xf32>
    %147 = arith.mulf %142, %146 : vector<2x32xf32>
    %148 = arith.index_cast %127 : i32 to index
    %c0_43 = arith.constant 0 : index
    %149 = vector.load %arg14[%148, %c0_43] : memref<16x32xf32, #tpu.memory_space<vmem>>, vector<2x32xf32>
    tpu.vector_store %arg14[%148, %c0_43], %147 {strides = array<i32>} : memref<16x32xf32, #tpu.memory_space<vmem>>, vector<2x32xf32>,
    %c5_i32 = arith.constant 5 : i32
    %c2_i32_44 = arith.constant 2 : i32
    %150 = arith.muli %c5_i32, %c2_i32_44 : i32
    %151 = tpu.assume_multiple %150, 2 : i32
    %152 = arith.index_cast %151 : i32 to index
    %c0_45 = arith.constant 0 : index
    %153 = vector.load %arg13[%152, %c0_45] : memref<16x128xf32, #tpu.memory_space<vmem>>, vector<2x128xf32>
    %cst_46 = arith.constant dense<0.000000e+00> : vector<2x128xf32>
    %154 = tpu.matmul %147, %18, %cst_46 {dimension_numbers = #tpu.dot_dimension_numbers<[1], [0], [0], [1], [0, 0, 1, 1], [], []>} : vector<2x32xf32>, vector<32x128xf32>, vector<2x128xf32> -> vector<2x128xf32>
    %155 = arith.addf %153, %154 : vector<2x128xf32>
    %156 = vector.broadcast %8 : vector<1x128xf32> to vector<2x128xf32>
    %157 = arith.mulf %156, %155 : vector<2x128xf32>
    %158 = math.tanh %157 : vector<2x128xf32>
    %159 = vector.broadcast %8 : vector<1x128xf32> to vector<2x128xf32>
    %160 = arith.mulf %159, %158 : vector<2x128xf32>
    %161 = vector.broadcast %11 : vector<1x128xf32> to vector<2x128xf32>
    %162 = arith.addf %160, %161 : vector<2x128xf32>
    %163 = vector.extract_strided_slice %162 {offsets = [0, 0], sizes = [2, 32], strides = [1, 1]} : vector<2x128xf32> to vector<2x32xf32>
    %164 = vector.extract_strided_slice %162 {offsets = [0, 32], sizes = [2, 32], strides = [1, 1]} : vector<2x128xf32> to vector<2x32xf32>
    %165 = vector.extract_strided_slice %162 {offsets = [0, 64], sizes = [2, 32], strides = [1, 1]} : vector<2x128xf32> to vector<2x32xf32>
    %166 = vector.extract_strided_slice %162 {offsets = [0, 96], sizes = [2, 32], strides = [1, 1]} : vector<2x128xf32> to vector<2x32xf32>
    %167 = arith.mulf %164, %145 : vector<2x32xf32>
    %168 = arith.mulf %163, %165 : vector<2x32xf32>
    %169 = arith.addf %167, %168 : vector<2x32xf32>
    %170 = math.tanh %169 : vector<2x32xf32>
    %171 = arith.mulf %166, %170 : vector<2x32xf32>
    %172 = arith.index_cast %151 : i32 to index
    %c0_47 = arith.constant 0 : index
    %173 = vector.load %arg14[%172, %c0_47] : memref<16x32xf32, #tpu.memory_space<vmem>>, vector<2x32xf32>
    tpu.vector_store %arg14[%172, %c0_47], %171 {strides = array<i32>} : memref<16x32xf32, #tpu.memory_space<vmem>>, vector<2x32xf32>,
    %c6_i32 = arith.constant 6 : i32
    %c2_i32_48 = arith.constant 2 : i32
    %174 = arith.muli %c6_i32, %c2_i32_48 : i32
    %175 = tpu.assume_multiple %174, 2 : i32
    %176 = arith.index_cast %175 : i32 to index
    %c0_49 = arith.constant 0 : index
    %177 = vector.load %arg13[%176, %c0_49] : memref<16x128xf32, #tpu.memory_space<vmem>>, vector<2x128xf32>
    %cst_50 = arith.constant dense<0.000000e+00> : vector<2x128xf32>
    %178 = tpu.matmul %171, %18, %cst_50 {dimension_numbers = #tpu.dot_dimension_numbers<[1], [0], [0], [1], [0, 0, 1, 1], [], []>} : vector<2x32xf32>, vector<32x128xf32>, vector<2x128xf32> -> vector<2x128xf32>
    %179 = arith.addf %177, %178 : vector<2x128xf32>
    %180 = vector.broadcast %8 : vector<1x128xf32> to vector<2x128xf32>
    %181 = arith.mulf %180, %179 : vector<2x128xf32>
    %182 = math.tanh %181 : vector<2x128xf32>
    %183 = vector.broadcast %8 : vector<1x128xf32> to vector<2x128xf32>
    %184 = arith.mulf %183, %182 : vector<2x128xf32>
    %185 = vector.broadcast %11 : vector<1x128xf32> to vector<2x128xf32>
    %186 = arith.addf %184, %185 : vector<2x128xf32>
    %187 = vector.extract_strided_slice %186 {offsets = [0, 0], sizes = [2, 32], strides = [1, 1]} : vector<2x128xf32> to vector<2x32xf32>
    %188 = vector.extract_strided_slice %186 {offsets = [0, 32], sizes = [2, 32], strides = [1, 1]} : vector<2x128xf32> to vector<2x32xf32>
    %189 = vector.extract_strided_slice %186 {offsets = [0, 64], sizes = [2, 32], strides = [1, 1]} : vector<2x128xf32> to vector<2x32xf32>
    %190 = vector.extract_strided_slice %186 {offsets = [0, 96], sizes = [2, 32], strides = [1, 1]} : vector<2x128xf32> to vector<2x32xf32>
    %191 = arith.mulf %188, %169 : vector<2x32xf32>
    %192 = arith.mulf %187, %189 : vector<2x32xf32>
    %193 = arith.addf %191, %192 : vector<2x32xf32>
    %194 = math.tanh %193 : vector<2x32xf32>
    %195 = arith.mulf %190, %194 : vector<2x32xf32>
    %196 = arith.index_cast %175 : i32 to index
    %c0_51 = arith.constant 0 : index
    %197 = vector.load %arg14[%196, %c0_51] : memref<16x32xf32, #tpu.memory_space<vmem>>, vector<2x32xf32>
    tpu.vector_store %arg14[%196, %c0_51], %195 {strides = array<i32>} : memref<16x32xf32, #tpu.memory_space<vmem>>, vector<2x32xf32>,
    %c7_i32 = arith.constant 7 : i32
    %c2_i32_52 = arith.constant 2 : i32
    %198 = arith.muli %c7_i32, %c2_i32_52 : i32
    %199 = tpu.assume_multiple %198, 2 : i32
    %200 = arith.index_cast %199 : i32 to index
    %c0_53 = arith.constant 0 : index
    %201 = vector.load %arg13[%200, %c0_53] : memref<16x128xf32, #tpu.memory_space<vmem>>, vector<2x128xf32>
    %cst_54 = arith.constant dense<0.000000e+00> : vector<2x128xf32>
    %202 = tpu.matmul %195, %18, %cst_54 {dimension_numbers = #tpu.dot_dimension_numbers<[1], [0], [0], [1], [0, 0, 1, 1], [], []>} : vector<2x32xf32>, vector<32x128xf32>, vector<2x128xf32> -> vector<2x128xf32>
    %203 = arith.addf %201, %202 : vector<2x128xf32>
    %204 = vector.broadcast %8 : vector<1x128xf32> to vector<2x128xf32>
    %205 = arith.mulf %204, %203 : vector<2x128xf32>
    %206 = math.tanh %205 : vector<2x128xf32>
    %207 = vector.broadcast %8 : vector<1x128xf32> to vector<2x128xf32>
    %208 = arith.mulf %207, %206 : vector<2x128xf32>
    %209 = vector.broadcast %11 : vector<1x128xf32> to vector<2x128xf32>
    %210 = arith.addf %208, %209 : vector<2x128xf32>
    %211 = vector.extract_strided_slice %210 {offsets = [0, 0], sizes = [2, 32], strides = [1, 1]} : vector<2x128xf32> to vector<2x32xf32>
    %212 = vector.extract_strided_slice %210 {offsets = [0, 32], sizes = [2, 32], strides = [1, 1]} : vector<2x128xf32> to vector<2x32xf32>
    %213 = vector.extract_strided_slice %210 {offsets = [0, 64], sizes = [2, 32], strides = [1, 1]} : vector<2x128xf32> to vector<2x32xf32>
    %214 = vector.extract_strided_slice %210 {offsets = [0, 96], sizes = [2, 32], strides = [1, 1]} : vector<2x128xf32> to vector<2x32xf32>
    %215 = arith.mulf %212, %193 : vector<2x32xf32>
    %216 = arith.mulf %211, %213 : vector<2x32xf32>
    %217 = arith.addf %215, %216 : vector<2x32xf32>
    %218 = math.tanh %217 : vector<2x32xf32>
    %219 = arith.mulf %214, %218 : vector<2x32xf32>
    %220 = arith.index_cast %199 : i32 to index
    %c0_55 = arith.constant 0 : index
    %221 = vector.load %arg14[%220, %c0_55] : memref<16x32xf32, #tpu.memory_space<vmem>>, vector<2x32xf32>
    tpu.vector_store %arg14[%220, %c0_55], %219 {strides = array<i32>} : memref<16x32xf32, #tpu.memory_space<vmem>>, vector<2x32xf32>,
    %c8_i32 = arith.constant 8 : i32
    %c0_56 = arith.constant 0 : index
    %c0_57 = arith.constant 0 : index
    %c0_58 = arith.constant 0 : index
    %222 = vector.load %arg11[%c0_56, %c0_57, %c0_58] : memref<2x2x32xf32, #tpu.memory_space<vmem>>, vector<1x2x32xf32>
    %223 = vector.shape_cast %222 : vector<1x2x32xf32> to vector<2x32xf32>
    %224 = vector.shape_cast %219 : vector<2x32xf32> to vector<1x2x32xf32>
    tpu.vector_store %arg11[%c0_56, %c0_57, %c0_58], %224 {strides = array<i32>} : memref<2x2x32xf32, #tpu.memory_space<vmem>>, vector<1x2x32xf32>,
    %c0_59 = arith.constant 0 : index
    %c0_60 = arith.constant 0 : index
    %c0_61 = arith.constant 0 : index
    %225 = vector.load %arg12[%c0_59, %c0_60, %c0_61] : memref<2x2x32xf32, #tpu.memory_space<vmem>>, vector<1x2x32xf32>
    %226 = vector.shape_cast %225 : vector<1x2x32xf32> to vector<2x32xf32>
    %227 = vector.shape_cast %217 : vector<2x32xf32> to vector<1x2x32xf32>
    tpu.vector_store %arg12[%c0_59, %c0_60, %c0_61], %227 {strides = array<i32>} : memref<2x2x32xf32, #tpu.memory_space<vmem>>, vector<1x2x32xf32>,
    %c1 = arith.constant 1 : index
    %c0_62 = arith.constant 0 : index
    %c0_63 = arith.constant 0 : index
    %228 = vector.load %arg3[%c1, %c0_62, %c0_63] : memref<2x32x128xf32, #tpu.memory_space<vmem>>, vector<1x32x128xf32>
    %229 = vector.shape_cast %228 : vector<1x32x128xf32> to vector<32x128xf32>
    %c1_64 = arith.constant 1 : index
    %c0_65 = arith.constant 0 : index
    %c0_66 = arith.constant 0 : index
    %230 = vector.load %arg4[%c1_64, %c0_65, %c0_66] : memref<2x32x128xf32, #tpu.memory_space<vmem>>, vector<1x32x128xf32>
    %231 = vector.shape_cast %230 : vector<1x32x128xf32> to vector<32x128xf32>
    %c1_67 = arith.constant 1 : index
    %c0_68 = arith.constant 0 : index
    %c0_69 = arith.constant 0 : index
    %232 = vector.load %arg5[%c1_67, %c0_68, %c0_69] : memref<2x1x128xf32, #tpu.memory_space<vmem>>, vector<1x1x128xf32>
    %233 = vector.shape_cast %232 : vector<1x1x128xf32> to vector<1x128xf32>
    %c0_70 = arith.constant 0 : index
    %c0_71 = arith.constant 0 : index
    %234 = vector.load %arg14[%c0_70, %c0_71] : memref<16x32xf32, #tpu.memory_space<vmem>>, vector<16x32xf32>
    %cst_72 = arith.constant dense<0.000000e+00> : vector<16x128xf32>
    %235 = tpu.matmul %234, %229, %cst_72 {dimension_numbers = #tpu.dot_dimension_numbers<[1], [0], [0], [1], [0, 0, 1, 1], [], []>} : vector<16x32xf32>, vector<32x128xf32>, vector<16x128xf32> -> vector<16x128xf32>
    %236 = vector.broadcast %233 : vector<1x128xf32> to vector<16x128xf32>
    %237 = arith.addf %235, %236 : vector<16x128xf32>
    %c0_73 = arith.constant 0 : index
    %c0_74 = arith.constant 0 : index
    %238 = vector.load %arg13[%c0_73, %c0_74] : memref<16x128xf32, #tpu.memory_space<vmem>>, vector<16x128xf32>
    tpu.vector_store %arg13[%c0_73, %c0_74], %237 {strides = array<i32>} : memref<16x128xf32, #tpu.memory_space<vmem>>, vector<16x128xf32>,
    %c1_75 = arith.constant 1 : index
    %c0_76 = arith.constant 0 : index
    %c0_77 = arith.constant 0 : index
    %239 = vector.load %arg11[%c1_75, %c0_76, %c0_77] : memref<2x2x32xf32, #tpu.memory_space<vmem>>, vector<1x2x32xf32>
    %240 = vector.shape_cast %239 : vector<1x2x32xf32> to vector<2x32xf32>
    %c1_78 = arith.constant 1 : index
    %c0_79 = arith.constant 0 : index
    %c0_80 = arith.constant 0 : index
    %241 = vector.load %arg12[%c1_78, %c0_79, %c0_80] : memref<2x2x32xf32, #tpu.memory_space<vmem>>, vector<1x2x32xf32>
    %242 = vector.shape_cast %241 : vector<1x2x32xf32> to vector<2x32xf32>
    %c0_i32_81 = arith.constant 0 : i32
    %c2_i32_82 = arith.constant 2 : i32
    %243 = arith.muli %c0_i32_81, %c2_i32_82 : i32
    %244 = tpu.assume_multiple %243, 2 : i32
    %245 = arith.index_cast %244 : i32 to index
    %c0_83 = arith.constant 0 : index
    %246 = vector.load %arg13[%245, %c0_83] : memref<16x128xf32, #tpu.memory_space<vmem>>, vector<2x128xf32>
    %cst_84 = arith.constant dense<0.000000e+00> : vector<2x128xf32>
    %247 = tpu.matmul %240, %231, %cst_84 {dimension_numbers = #tpu.dot_dimension_numbers<[1], [0], [0], [1], [0, 0, 1, 1], [], []>} : vector<2x32xf32>, vector<32x128xf32>, vector<2x128xf32> -> vector<2x128xf32>
    %248 = arith.addf %246, %247 : vector<2x128xf32>
    %249 = vector.broadcast %8 : vector<1x128xf32> to vector<2x128xf32>
    %250 = arith.mulf %249, %248 : vector<2x128xf32>
    %251 = math.tanh %250 : vector<2x128xf32>
    %252 = vector.broadcast %8 : vector<1x128xf32> to vector<2x128xf32>
    %253 = arith.mulf %252, %251 : vector<2x128xf32>
    %254 = vector.broadcast %11 : vector<1x128xf32> to vector<2x128xf32>
    %255 = arith.addf %253, %254 : vector<2x128xf32>
    %256 = vector.extract_strided_slice %255 {offsets = [0, 0], sizes = [2, 32], strides = [1, 1]} : vector<2x128xf32> to vector<2x32xf32>
    %257 = vector.extract_strided_slice %255 {offsets = [0, 32], sizes = [2, 32], strides = [1, 1]} : vector<2x128xf32> to vector<2x32xf32>
    %258 = vector.extract_strided_slice %255 {offsets = [0, 64], sizes = [2, 32], strides = [1, 1]} : vector<2x128xf32> to vector<2x32xf32>
    %259 = vector.extract_strided_slice %255 {offsets = [0, 96], sizes = [2, 32], strides = [1, 1]} : vector<2x128xf32> to vector<2x32xf32>
    %260 = arith.mulf %257, %242 : vector<2x32xf32>
    %261 = arith.mulf %256, %258 : vector<2x32xf32>
    %262 = arith.addf %260, %261 : vector<2x32xf32>
    %263 = math.tanh %262 : vector<2x32xf32>
    %264 = arith.mulf %259, %263 : vector<2x32xf32>
    %265 = arith.index_cast %244 : i32 to index
    %c0_85 = arith.constant 0 : index
    %266 = vector.load %arg14[%265, %c0_85] : memref<16x32xf32, #tpu.memory_space<vmem>>, vector<2x32xf32>
    tpu.vector_store %arg14[%265, %c0_85], %264 {strides = array<i32>} : memref<16x32xf32, #tpu.memory_space<vmem>>, vector<2x32xf32>,
    %c1_i32_86 = arith.constant 1 : i32
    %c2_i32_87 = arith.constant 2 : i32
    %267 = arith.muli %c1_i32_86, %c2_i32_87 : i32
    %268 = tpu.assume_multiple %267, 2 : i32
    %269 = arith.index_cast %268 : i32 to index
    %c0_88 = arith.constant 0 : index
    %270 = vector.load %arg13[%269, %c0_88] : memref<16x128xf32, #tpu.memory_space<vmem>>, vector<2x128xf32>
    %cst_89 = arith.constant dense<0.000000e+00> : vector<2x128xf32>
    %271 = tpu.matmul %264, %231, %cst_89 {dimension_numbers = #tpu.dot_dimension_numbers<[1], [0], [0], [1], [0, 0, 1, 1], [], []>} : vector<2x32xf32>, vector<32x128xf32>, vector<2x128xf32> -> vector<2x128xf32>
    %272 = arith.addf %270, %271 : vector<2x128xf32>
    %273 = vector.broadcast %8 : vector<1x128xf32> to vector<2x128xf32>
    %274 = arith.mulf %273, %272 : vector<2x128xf32>
    %275 = math.tanh %274 : vector<2x128xf32>
    %276 = vector.broadcast %8 : vector<1x128xf32> to vector<2x128xf32>
    %277 = arith.mulf %276, %275 : vector<2x128xf32>
    %278 = vector.broadcast %11 : vector<1x128xf32> to vector<2x128xf32>
    %279 = arith.addf %277, %278 : vector<2x128xf32>
    %280 = vector.extract_strided_slice %279 {offsets = [0, 0], sizes = [2, 32], strides = [1, 1]} : vector<2x128xf32> to vector<2x32xf32>
    %281 = vector.extract_strided_slice %279 {offsets = [0, 32], sizes = [2, 32], strides = [1, 1]} : vector<2x128xf32> to vector<2x32xf32>
    %282 = vector.extract_strided_slice %279 {offsets = [0, 64], sizes = [2, 32], strides = [1, 1]} : vector<2x128xf32> to vector<2x32xf32>
    %283 = vector.extract_strided_slice %279 {offsets = [0, 96], sizes = [2, 32], strides = [1, 1]} : vector<2x128xf32> to vector<2x32xf32>
    %284 = arith.mulf %281, %262 : vector<2x32xf32>
    %285 = arith.mulf %280, %282 : vector<2x32xf32>
    %286 = arith.addf %284, %285 : vector<2x32xf32>
    %287 = math.tanh %286 : vector<2x32xf32>
    %288 = arith.mulf %283, %287 : vector<2x32xf32>
    %289 = arith.index_cast %268 : i32 to index
    %c0_90 = arith.constant 0 : index
    %290 = vector.load %arg14[%289, %c0_90] : memref<16x32xf32, #tpu.memory_space<vmem>>, vector<2x32xf32>
    tpu.vector_store %arg14[%289, %c0_90], %288 {strides = array<i32>} : memref<16x32xf32, #tpu.memory_space<vmem>>, vector<2x32xf32>,
    %c2_i32_91 = arith.constant 2 : i32
    %c2_i32_92 = arith.constant 2 : i32
    %291 = arith.muli %c2_i32_91, %c2_i32_92 : i32
    %292 = tpu.assume_multiple %291, 2 : i32
    %293 = arith.index_cast %292 : i32 to index
    %c0_93 = arith.constant 0 : index
    %294 = vector.load %arg13[%293, %c0_93] : memref<16x128xf32, #tpu.memory_space<vmem>>, vector<2x128xf32>
    %cst_94 = arith.constant dense<0.000000e+00> : vector<2x128xf32>
    %295 = tpu.matmul %288, %231, %cst_94 {dimension_numbers = #tpu.dot_dimension_numbers<[1], [0], [0], [1], [0, 0, 1, 1], [], []>} : vector<2x32xf32>, vector<32x128xf32>, vector<2x128xf32> -> vector<2x128xf32>
    %296 = arith.addf %294, %295 : vector<2x128xf32>
    %297 = vector.broadcast %8 : vector<1x128xf32> to vector<2x128xf32>
    %298 = arith.mulf %297, %296 : vector<2x128xf32>
    %299 = math.tanh %298 : vector<2x128xf32>
    %300 = vector.broadcast %8 : vector<1x128xf32> to vector<2x128xf32>
    %301 = arith.mulf %300, %299 : vector<2x128xf32>
    %302 = vector.broadcast %11 : vector<1x128xf32> to vector<2x128xf32>
    %303 = arith.addf %301, %302 : vector<2x128xf32>
    %304 = vector.extract_strided_slice %303 {offsets = [0, 0], sizes = [2, 32], strides = [1, 1]} : vector<2x128xf32> to vector<2x32xf32>
    %305 = vector.extract_strided_slice %303 {offsets = [0, 32], sizes = [2, 32], strides = [1, 1]} : vector<2x128xf32> to vector<2x32xf32>
    %306 = vector.extract_strided_slice %303 {offsets = [0, 64], sizes = [2, 32], strides = [1, 1]} : vector<2x128xf32> to vector<2x32xf32>
    %307 = vector.extract_strided_slice %303 {offsets = [0, 96], sizes = [2, 32], strides = [1, 1]} : vector<2x128xf32> to vector<2x32xf32>
    %308 = arith.mulf %305, %286 : vector<2x32xf32>
    %309 = arith.mulf %304, %306 : vector<2x32xf32>
    %310 = arith.addf %308, %309 : vector<2x32xf32>
    %311 = math.tanh %310 : vector<2x32xf32>
    %312 = arith.mulf %307, %311 : vector<2x32xf32>
    %313 = arith.index_cast %292 : i32 to index
    %c0_95 = arith.constant 0 : index
    %314 = vector.load %arg14[%313, %c0_95] : memref<16x32xf32, #tpu.memory_space<vmem>>, vector<2x32xf32>
    tpu.vector_store %arg14[%313, %c0_95], %312 {strides = array<i32>} : memref<16x32xf32, #tpu.memory_space<vmem>>, vector<2x32xf32>,
    %c3_i32_96 = arith.constant 3 : i32
    %c2_i32_97 = arith.constant 2 : i32
    %315 = arith.muli %c3_i32_96, %c2_i32_97 : i32
    %316 = tpu.assume_multiple %315, 2 : i32
    %317 = arith.index_cast %316 : i32 to index
    %c0_98 = arith.constant 0 : index
    %318 = vector.load %arg13[%317, %c0_98] : memref<16x128xf32, #tpu.memory_space<vmem>>, vector<2x128xf32>
    %cst_99 = arith.constant dense<0.000000e+00> : vector<2x128xf32>
    %319 = tpu.matmul %312, %231, %cst_99 {dimension_numbers = #tpu.dot_dimension_numbers<[1], [0], [0], [1], [0, 0, 1, 1], [], []>} : vector<2x32xf32>, vector<32x128xf32>, vector<2x128xf32> -> vector<2x128xf32>
    %320 = arith.addf %318, %319 : vector<2x128xf32>
    %321 = vector.broadcast %8 : vector<1x128xf32> to vector<2x128xf32>
    %322 = arith.mulf %321, %320 : vector<2x128xf32>
    %323 = math.tanh %322 : vector<2x128xf32>
    %324 = vector.broadcast %8 : vector<1x128xf32> to vector<2x128xf32>
    %325 = arith.mulf %324, %323 : vector<2x128xf32>
    %326 = vector.broadcast %11 : vector<1x128xf32> to vector<2x128xf32>
    %327 = arith.addf %325, %326 : vector<2x128xf32>
    %328 = vector.extract_strided_slice %327 {offsets = [0, 0], sizes = [2, 32], strides = [1, 1]} : vector<2x128xf32> to vector<2x32xf32>
    %329 = vector.extract_strided_slice %327 {offsets = [0, 32], sizes = [2, 32], strides = [1, 1]} : vector<2x128xf32> to vector<2x32xf32>
    %330 = vector.extract_strided_slice %327 {offsets = [0, 64], sizes = [2, 32], strides = [1, 1]} : vector<2x128xf32> to vector<2x32xf32>
    %331 = vector.extract_strided_slice %327 {offsets = [0, 96], sizes = [2, 32], strides = [1, 1]} : vector<2x128xf32> to vector<2x32xf32>
    %332 = arith.mulf %329, %310 : vector<2x32xf32>
    %333 = arith.mulf %328, %330 : vector<2x32xf32>
    %334 = arith.addf %332, %333 : vector<2x32xf32>
    %335 = math.tanh %334 : vector<2x32xf32>
    %336 = arith.mulf %331, %335 : vector<2x32xf32>
    %337 = arith.index_cast %316 : i32 to index
    %c0_100 = arith.constant 0 : index
    %338 = vector.load %arg14[%337, %c0_100] : memref<16x32xf32, #tpu.memory_space<vmem>>, vector<2x32xf32>
    tpu.vector_store %arg14[%337, %c0_100], %336 {strides = array<i32>} : memref<16x32xf32, #tpu.memory_space<vmem>>, vector<2x32xf32>,
    %c4_i32_101 = arith.constant 4 : i32
    %c2_i32_102 = arith.constant 2 : i32
    %339 = arith.muli %c4_i32_101, %c2_i32_102 : i32
    %340 = tpu.assume_multiple %339, 2 : i32
    %341 = arith.index_cast %340 : i32 to index
    %c0_103 = arith.constant 0 : index
    %342 = vector.load %arg13[%341, %c0_103] : memref<16x128xf32, #tpu.memory_space<vmem>>, vector<2x128xf32>
    %cst_104 = arith.constant dense<0.000000e+00> : vector<2x128xf32>
    %343 = tpu.matmul %336, %231, %cst_104 {dimension_numbers = #tpu.dot_dimension_numbers<[1], [0], [0], [1], [0, 0, 1, 1], [], []>} : vector<2x32xf32>, vector<32x128xf32>, vector<2x128xf32> -> vector<2x128xf32>
    %344 = arith.addf %342, %343 : vector<2x128xf32>
    %345 = vector.broadcast %8 : vector<1x128xf32> to vector<2x128xf32>
    %346 = arith.mulf %345, %344 : vector<2x128xf32>
    %347 = math.tanh %346 : vector<2x128xf32>
    %348 = vector.broadcast %8 : vector<1x128xf32> to vector<2x128xf32>
    %349 = arith.mulf %348, %347 : vector<2x128xf32>
    %350 = vector.broadcast %11 : vector<1x128xf32> to vector<2x128xf32>
    %351 = arith.addf %349, %350 : vector<2x128xf32>
    %352 = vector.extract_strided_slice %351 {offsets = [0, 0], sizes = [2, 32], strides = [1, 1]} : vector<2x128xf32> to vector<2x32xf32>
    %353 = vector.extract_strided_slice %351 {offsets = [0, 32], sizes = [2, 32], strides = [1, 1]} : vector<2x128xf32> to vector<2x32xf32>
    %354 = vector.extract_strided_slice %351 {offsets = [0, 64], sizes = [2, 32], strides = [1, 1]} : vector<2x128xf32> to vector<2x32xf32>
    %355 = vector.extract_strided_slice %351 {offsets = [0, 96], sizes = [2, 32], strides = [1, 1]} : vector<2x128xf32> to vector<2x32xf32>
    %356 = arith.mulf %353, %334 : vector<2x32xf32>
    %357 = arith.mulf %352, %354 : vector<2x32xf32>
    %358 = arith.addf %356, %357 : vector<2x32xf32>
    %359 = math.tanh %358 : vector<2x32xf32>
    %360 = arith.mulf %355, %359 : vector<2x32xf32>
    %361 = arith.index_cast %340 : i32 to index
    %c0_105 = arith.constant 0 : index
    %362 = vector.load %arg14[%361, %c0_105] : memref<16x32xf32, #tpu.memory_space<vmem>>, vector<2x32xf32>
    tpu.vector_store %arg14[%361, %c0_105], %360 {strides = array<i32>} : memref<16x32xf32, #tpu.memory_space<vmem>>, vector<2x32xf32>,
    %c5_i32_106 = arith.constant 5 : i32
    %c2_i32_107 = arith.constant 2 : i32
    %363 = arith.muli %c5_i32_106, %c2_i32_107 : i32
    %364 = tpu.assume_multiple %363, 2 : i32
    %365 = arith.index_cast %364 : i32 to index
    %c0_108 = arith.constant 0 : index
    %366 = vector.load %arg13[%365, %c0_108] : memref<16x128xf32, #tpu.memory_space<vmem>>, vector<2x128xf32>
    %cst_109 = arith.constant dense<0.000000e+00> : vector<2x128xf32>
    %367 = tpu.matmul %360, %231, %cst_109 {dimension_numbers = #tpu.dot_dimension_numbers<[1], [0], [0], [1], [0, 0, 1, 1], [], []>} : vector<2x32xf32>, vector<32x128xf32>, vector<2x128xf32> -> vector<2x128xf32>
    %368 = arith.addf %366, %367 : vector<2x128xf32>
    %369 = vector.broadcast %8 : vector<1x128xf32> to vector<2x128xf32>
    %370 = arith.mulf %369, %368 : vector<2x128xf32>
    %371 = math.tanh %370 : vector<2x128xf32>
    %372 = vector.broadcast %8 : vector<1x128xf32> to vector<2x128xf32>
    %373 = arith.mulf %372, %371 : vector<2x128xf32>
    %374 = vector.broadcast %11 : vector<1x128xf32> to vector<2x128xf32>
    %375 = arith.addf %373, %374 : vector<2x128xf32>
    %376 = vector.extract_strided_slice %375 {offsets = [0, 0], sizes = [2, 32], strides = [1, 1]} : vector<2x128xf32> to vector<2x32xf32>
    %377 = vector.extract_strided_slice %375 {offsets = [0, 32], sizes = [2, 32], strides = [1, 1]} : vector<2x128xf32> to vector<2x32xf32>
    %378 = vector.extract_strided_slice %375 {offsets = [0, 64], sizes = [2, 32], strides = [1, 1]} : vector<2x128xf32> to vector<2x32xf32>
    %379 = vector.extract_strided_slice %375 {offsets = [0, 96], sizes = [2, 32], strides = [1, 1]} : vector<2x128xf32> to vector<2x32xf32>
    %380 = arith.mulf %377, %358 : vector<2x32xf32>
    %381 = arith.mulf %376, %378 : vector<2x32xf32>
    %382 = arith.addf %380, %381 : vector<2x32xf32>
    %383 = math.tanh %382 : vector<2x32xf32>
    %384 = arith.mulf %379, %383 : vector<2x32xf32>
    %385 = arith.index_cast %364 : i32 to index
    %c0_110 = arith.constant 0 : index
    %386 = vector.load %arg14[%385, %c0_110] : memref<16x32xf32, #tpu.memory_space<vmem>>, vector<2x32xf32>
    tpu.vector_store %arg14[%385, %c0_110], %384 {strides = array<i32>} : memref<16x32xf32, #tpu.memory_space<vmem>>, vector<2x32xf32>,
    %c6_i32_111 = arith.constant 6 : i32
    %c2_i32_112 = arith.constant 2 : i32
    %387 = arith.muli %c6_i32_111, %c2_i32_112 : i32
    %388 = tpu.assume_multiple %387, 2 : i32
    %389 = arith.index_cast %388 : i32 to index
    %c0_113 = arith.constant 0 : index
    %390 = vector.load %arg13[%389, %c0_113] : memref<16x128xf32, #tpu.memory_space<vmem>>, vector<2x128xf32>
    %cst_114 = arith.constant dense<0.000000e+00> : vector<2x128xf32>
    %391 = tpu.matmul %384, %231, %cst_114 {dimension_numbers = #tpu.dot_dimension_numbers<[1], [0], [0], [1], [0, 0, 1, 1], [], []>} : vector<2x32xf32>, vector<32x128xf32>, vector<2x128xf32> -> vector<2x128xf32>
    %392 = arith.addf %390, %391 : vector<2x128xf32>
    %393 = vector.broadcast %8 : vector<1x128xf32> to vector<2x128xf32>
    %394 = arith.mulf %393, %392 : vector<2x128xf32>
    %395 = math.tanh %394 : vector<2x128xf32>
    %396 = vector.broadcast %8 : vector<1x128xf32> to vector<2x128xf32>
    %397 = arith.mulf %396, %395 : vector<2x128xf32>
    %398 = vector.broadcast %11 : vector<1x128xf32> to vector<2x128xf32>
    %399 = arith.addf %397, %398 : vector<2x128xf32>
    %400 = vector.extract_strided_slice %399 {offsets = [0, 0], sizes = [2, 32], strides = [1, 1]} : vector<2x128xf32> to vector<2x32xf32>
    %401 = vector.extract_strided_slice %399 {offsets = [0, 32], sizes = [2, 32], strides = [1, 1]} : vector<2x128xf32> to vector<2x32xf32>
    %402 = vector.extract_strided_slice %399 {offsets = [0, 64], sizes = [2, 32], strides = [1, 1]} : vector<2x128xf32> to vector<2x32xf32>
    %403 = vector.extract_strided_slice %399 {offsets = [0, 96], sizes = [2, 32], strides = [1, 1]} : vector<2x128xf32> to vector<2x32xf32>
    %404 = arith.mulf %401, %382 : vector<2x32xf32>
    %405 = arith.mulf %400, %402 : vector<2x32xf32>
    %406 = arith.addf %404, %405 : vector<2x32xf32>
    %407 = math.tanh %406 : vector<2x32xf32>
    %408 = arith.mulf %403, %407 : vector<2x32xf32>
    %409 = arith.index_cast %388 : i32 to index
    %c0_115 = arith.constant 0 : index
    %410 = vector.load %arg14[%409, %c0_115] : memref<16x32xf32, #tpu.memory_space<vmem>>, vector<2x32xf32>
    tpu.vector_store %arg14[%409, %c0_115], %408 {strides = array<i32>} : memref<16x32xf32, #tpu.memory_space<vmem>>, vector<2x32xf32>,
    %c7_i32_116 = arith.constant 7 : i32
    %c2_i32_117 = arith.constant 2 : i32
    %411 = arith.muli %c7_i32_116, %c2_i32_117 : i32
    %412 = tpu.assume_multiple %411, 2 : i32
    %413 = arith.index_cast %412 : i32 to index
    %c0_118 = arith.constant 0 : index
    %414 = vector.load %arg13[%413, %c0_118] : memref<16x128xf32, #tpu.memory_space<vmem>>, vector<2x128xf32>
    %cst_119 = arith.constant dense<0.000000e+00> : vector<2x128xf32>
    %415 = tpu.matmul %408, %231, %cst_119 {dimension_numbers = #tpu.dot_dimension_numbers<[1], [0], [0], [1], [0, 0, 1, 1], [], []>} : vector<2x32xf32>, vector<32x128xf32>, vector<2x128xf32> -> vector<2x128xf32>
    %416 = arith.addf %414, %415 : vector<2x128xf32>
    %417 = vector.broadcast %8 : vector<1x128xf32> to vector<2x128xf32>
    %418 = arith.mulf %417, %416 : vector<2x128xf32>
    %419 = math.tanh %418 : vector<2x128xf32>
    %420 = vector.broadcast %8 : vector<1x128xf32> to vector<2x128xf32>
    %421 = arith.mulf %420, %419 : vector<2x128xf32>
    %422 = vector.broadcast %11 : vector<1x128xf32> to vector<2x128xf32>
    %423 = arith.addf %421, %422 : vector<2x128xf32>
    %424 = vector.extract_strided_slice %423 {offsets = [0, 0], sizes = [2, 32], strides = [1, 1]} : vector<2x128xf32> to vector<2x32xf32>
    %425 = vector.extract_strided_slice %423 {offsets = [0, 32], sizes = [2, 32], strides = [1, 1]} : vector<2x128xf32> to vector<2x32xf32>
    %426 = vector.extract_strided_slice %423 {offsets = [0, 64], sizes = [2, 32], strides = [1, 1]} : vector<2x128xf32> to vector<2x32xf32>
    %427 = vector.extract_strided_slice %423 {offsets = [0, 96], sizes = [2, 32], strides = [1, 1]} : vector<2x128xf32> to vector<2x32xf32>
    %428 = arith.mulf %425, %406 : vector<2x32xf32>
    %429 = arith.mulf %424, %426 : vector<2x32xf32>
    %430 = arith.addf %428, %429 : vector<2x32xf32>
    %431 = math.tanh %430 : vector<2x32xf32>
    %432 = arith.mulf %427, %431 : vector<2x32xf32>
    %433 = arith.index_cast %412 : i32 to index
    %c0_120 = arith.constant 0 : index
    %434 = vector.load %arg14[%433, %c0_120] : memref<16x32xf32, #tpu.memory_space<vmem>>, vector<2x32xf32>
    tpu.vector_store %arg14[%433, %c0_120], %432 {strides = array<i32>} : memref<16x32xf32, #tpu.memory_space<vmem>>, vector<2x32xf32>,
    %c8_i32_121 = arith.constant 8 : i32
    %c1_122 = arith.constant 1 : index
    %c0_123 = arith.constant 0 : index
    %c0_124 = arith.constant 0 : index
    %435 = vector.load %arg11[%c1_122, %c0_123, %c0_124] : memref<2x2x32xf32, #tpu.memory_space<vmem>>, vector<1x2x32xf32>
    %436 = vector.shape_cast %435 : vector<1x2x32xf32> to vector<2x32xf32>
    %437 = vector.shape_cast %432 : vector<2x32xf32> to vector<1x2x32xf32>
    tpu.vector_store %arg11[%c1_122, %c0_123, %c0_124], %437 {strides = array<i32>} : memref<2x2x32xf32, #tpu.memory_space<vmem>>, vector<1x2x32xf32>,
    %c1_125 = arith.constant 1 : index
    %c0_126 = arith.constant 0 : index
    %c0_127 = arith.constant 0 : index
    %438 = vector.load %arg12[%c1_125, %c0_126, %c0_127] : memref<2x2x32xf32, #tpu.memory_space<vmem>>, vector<1x2x32xf32>
    %439 = vector.shape_cast %438 : vector<1x2x32xf32> to vector<2x32xf32>
    %440 = vector.shape_cast %430 : vector<2x32xf32> to vector<1x2x32xf32>
    tpu.vector_store %arg12[%c1_125, %c0_126, %c0_127], %440 {strides = array<i32>} : memref<2x2x32xf32, #tpu.memory_space<vmem>>, vector<1x2x32xf32>,
    %c0_128 = arith.constant 0 : index
    %c0_129 = arith.constant 0 : index
    %441 = tpu.strided_load %arg14[%c0_128, %c0_129] {strides = array<i32: 2, 1>} : memref<16x32xf32, #tpu.memory_space<vmem>>, vector<8x32xf32>
    %c0_130 = arith.constant 0 : index
    %c0_131 = arith.constant 0 : index
    %c0_132 = arith.constant 0 : index
    %442 = vector.load %arg8[%c0_130, %c0_131, %c0_132] : memref<2x8x32xf32, #tpu.memory_space<vmem>>, vector<1x8x32xf32>
    %443 = vector.shape_cast %442 : vector<1x8x32xf32> to vector<8x32xf32>
    %444 = vector.shape_cast %441 : vector<8x32xf32> to vector<1x8x32xf32>
    tpu.vector_store %arg8[%c0_130, %c0_131, %c0_132], %444 {strides = array<i32>} : memref<2x8x32xf32, #tpu.memory_space<vmem>>, vector<1x8x32xf32>,
    %c1_133 = arith.constant 1 : index
    %c0_134 = arith.constant 0 : index
    %445 = tpu.strided_load %arg14[%c1_133, %c0_134] {strides = array<i32: 2, 1>} : memref<16x32xf32, #tpu.memory_space<vmem>>, vector<8x32xf32>
    %c1_135 = arith.constant 1 : index
    %c0_136 = arith.constant 0 : index
    %c0_137 = arith.constant 0 : index
    %446 = vector.load %arg8[%c1_135, %c0_136, %c0_137] : memref<2x8x32xf32, #tpu.memory_space<vmem>>, vector<1x8x32xf32>
    %447 = vector.shape_cast %446 : vector<1x8x32xf32> to vector<8x32xf32>
    %448 = vector.shape_cast %445 : vector<8x32xf32> to vector<1x8x32xf32>
    tpu.vector_store %arg8[%c1_135, %c0_136, %c0_137], %448 {strides = array<i32>} : memref<2x8x32xf32, #tpu.memory_space<vmem>>, vector<1x8x32xf32>,
    %c0_138 = arith.constant 0 : index
    %c0_139 = arith.constant 0 : index
    %c0_140 = arith.constant 0 : index
    %449 = vector.load %arg11[%c0_138, %c0_139, %c0_140] : memref<2x2x32xf32, #tpu.memory_space<vmem>>, vector<2x2x32xf32>
    %c0_141 = arith.constant 0 : index
    %c0_142 = arith.constant 0 : index
    %c0_143 = arith.constant 0 : index
    %450 = vector.load %arg9[%c0_141, %c0_142, %c0_143] : memref<2x2x32xf32, #tpu.memory_space<vmem>>, vector<2x2x32xf32>
    tpu.vector_store %arg9[%c0_141, %c0_142, %c0_143], %449 {strides = array<i32>} : memref<2x2x32xf32, #tpu.memory_space<vmem>>, vector<2x2x32xf32>,
    %c0_144 = arith.constant 0 : index
    %c0_145 = arith.constant 0 : index
    %c0_146 = arith.constant 0 : index
    %451 = vector.load %arg12[%c0_144, %c0_145, %c0_146] : memref<2x2x32xf32, #tpu.memory_space<vmem>>, vector<2x2x32xf32>
    %c0_147 = arith.constant 0 : index
    %c0_148 = arith.constant 0 : index
    %c0_149 = arith.constant 0 : index
    %452 = vector.load %arg10[%c0_147, %c0_148, %c0_149] : memref<2x2x32xf32, #tpu.memory_space<vmem>>, vector<2x2x32xf32>
    tpu.vector_store %arg10[%c0_147, %c0_148, %c0_149], %451 {strides = array<i32>} : memref<2x2x32xf32, #tpu.memory_space<vmem>>, vector<2x2x32xf32>,
    return
  }
  func.func @transform_0(%arg0: i32, %arg1: i32) -> (i32, i32) {
    %c1_i32 = arith.constant 1 : i32
    %0 = arith.muli %arg0, %c1_i32 : i32
    %1 = arith.addi %0, %arg1 : i32
    %c0_i32 = arith.constant 0 : i32
    %c0_i32_0 = arith.constant 0 : i32
    return %1, %c0_i32 : i32, i32
  }
  func.func @transform_1(%arg0: i32, %arg1: i32) -> (i32, i32, i32) {
    %c0_i32 = arith.constant 0 : i32
    %c0_i32_0 = arith.constant 0 : i32
    %c0_i32_1 = arith.constant 0 : i32
    %c0_i32_2 = arith.constant 0 : i32
    return %c0_i32, %c0_i32_0, %c0_i32_1 : i32, i32, i32
  }
  func.func @transform_2(%arg0: i32, %arg1: i32) -> (i32, i32, i32) {
    %c0_i32 = arith.constant 0 : i32
    %c0_i32_0 = arith.constant 0 : i32
    %c0_i32_1 = arith.constant 0 : i32
    %c0_i32_2 = arith.constant 0 : i32
    return %c0_i32, %c0_i32_0, %c0_i32_1 : i32, i32, i32
  }
  func.func @transform_3(%arg0: i32, %arg1: i32) -> (i32, i32, i32) {
    %c0_i32 = arith.constant 0 : i32
    %c0_i32_0 = arith.constant 0 : i32
    %c0_i32_1 = arith.constant 0 : i32
    %c0_i32_2 = arith.constant 0 : i32
    return %c0_i32, %c0_i32_0, %c0_i32_1 : i32, i32, i32
  }
  func.func @transform_4(%arg0: i32, %arg1: i32) -> (i32, i32, i32) {
    %c0_i32 = arith.constant 0 : i32
    %c0_i32_0 = arith.constant 0 : i32
    %c0_i32_1 = arith.constant 0 : i32
    return %c0_i32, %arg0, %c0_i32_0 : i32, i32, i32
  }
  func.func @transform_5(%arg0: i32, %arg1: i32) -> (i32, i32, i32) {
    %c0_i32 = arith.constant 0 : i32
    %c0_i32_0 = arith.constant 0 : i32
    %c0_i32_1 = arith.constant 0 : i32
    return %c0_i32, %arg0, %c0_i32_0 : i32, i32, i32
  }
  func.func @transform_6(%arg0: i32, %arg1: i32) -> (i32, i32, i32) {
    %c0_i32 = arith.constant 0 : i32
    %c0_i32_0 = arith.constant 0 : i32
    return %arg0, %arg1, %c0_i32 : i32, i32, i32
  }
  func.func @transform_7(%arg0: i32, %arg1: i32) -> (i32, i32, i32) {
    %c0_i32 = arith.constant 0 : i32
    %c0_i32_0 = arith.constant 0 : i32
    %c0_i32_1 = arith.constant 0 : i32
    return %c0_i32, %arg0, %c0_i32_0 : i32, i32, i32
  }
  func.func @transform_8(%arg0: i32, %arg1: i32) -> (i32, i32, i32) {
    %c0_i32 = arith.constant 0 : i32
    %c0_i32_0 = arith.constant 0 : i32
    %c0_i32_1 = arith.constant 0 : i32
    return %c0_i32, %arg0, %c0_i32_0 : i32, i32, i32
  }
}

</mosaic_0001>

<llo_original>
// kernel: lstm_lm_forward.3
$region0: #{lstm_lm_forward.3}
  #allocation0 [shape = 'u32[]', space=smem, size = 0x4, offset = 0x4, fixed_abs, tag = 'smem constant byte address 0x4 - core index']
  #allocation1 [shape = 'u32[72,128]{1,0:T(1,128)}', space=vmem, size = 0x9000, scoped, tag = 'internal scratch']
  %s0 = inlined_call_operand.vmem [shape: f32[16,32], index: 0, kind: input, shape index: {}]
  %s1 = inlined_call_operand.vmem [shape: f32[256,32], index: 1, kind: input, shape index: {}]
  %s2 = inlined_call_operand.vmem [shape: f32[1,256], index: 2, kind: input, shape index: {}]
  %s3 = inlined_call_operand.hbm [shape: f32[16,256], index: 3, kind: output, shape index: {}]
  %s4 = sld [smem:[#allocation0]]
  $region22: #{lstm_lm_forward.3} parent=0
    _
  %s6 = ssub.s32 1, %s4
  %s7 = scalar_select 0, %s6, %s4
  $region1: #{lstm_lm_forward.3} parent=0
    #allocation2 [shape = 'u8[16384]{0}', space=vmem, size = 0x4000, scoped, tag = 'output window, operand 0, single buffered']
    #allocation3 [shape = 's32[1]{0}', space=sflag, size = 0x4, scoped, tag = 'scoped memory for lstm_lm_forward.3']
    %8 = vsyncpa [#allocation3], 0
    // Predicated region
    $region2: #{lstm_lm_forward.3} parent=1 // pred_check
      _
    $region3: #{lstm_lm_forward.3} parent=1 // pred_check_branch
      %10 = sbr.rel (0) target = $region5
    $region4: #{lstm_lm_forward.3} parent=1 // pred_region
      _
    $region5: #{lstm_lm_forward.3} parent=1 // pred_fallthru
      _
    // Predicated region
    $region6: #{lstm_lm_forward.3} parent=1 // pred_check
      _
    $region7: #{lstm_lm_forward.3} parent=1 // pred_check_branch
      %12 = sbr.rel (0) target = $region9
    $region8: #{lstm_lm_forward.3} parent=1 // pred_region
      _
    $region9: #{lstm_lm_forward.3} parent=1 // pred_fallthru
      _
    // Predicated region
    $region10: #{lstm_lm_forward.3} parent=1 // pred_check
      _
    $region11: #{lstm_lm_forward.3} parent=1 // pred_check_branch
      %14 = sbr.rel (0) target = $region13
    $region12: #{lstm_lm_forward.3} parent=1 // pred_region
      _
    $region13: #{lstm_lm_forward.3} parent=1 // pred_fallthru
      _
    %v15 = vld [vmem:[%s0] sm:$0xff]
    %v16 = vld [vmem:[%s0 + $0x8] sm:$0xff]
    %v17 = vld [vmem:[%s1] sm:$0xff]
    %v18 = vld [vmem:[%s1 + $0x8] sm:$0xff]
    %v19 = vld [vmem:[%s1 + $0x10] sm:$0xff]
    %v20 = vld [vmem:[%s1 + $0x18] sm:$0xff]
    %v21 = vld [vmem:[%s1 + $0x20] sm:$0xff]
    %v22 = vld [vmem:[%s1 + $0x28] sm:$0xff]
    %v23 = vld [vmem:[%s1 + $0x30] sm:$0xff]
    %v24 = vld [vmem:[%s1 + $0x38] sm:$0xff]
    %v25 = vld [vmem:[%s1 + $0x40] sm:$0xff]
    %v26 = vld [vmem:[%s1 + $0x48] sm:$0xff]
    %v27 = vld [vmem:[%s1 + $0x50] sm:$0xff]
    %v28 = vld [vmem:[%s1 + $0x58] sm:$0xff]
    %v29 = vld [vmem:[%s1 + $0x60] sm:$0xff]
    %v30 = vld [vmem:[%s1 + $0x68] sm:$0xff]
    %v31 = vld [vmem:[%s1 + $0x70] sm:$0xff]
    %v32 = vld [vmem:[%s1 + $0x78] sm:$0xff]
    %v33 = vld [vmem:[%s1 + $0x80] sm:$0xff]
    %v34 = vld [vmem:[%s1 + $0x88] sm:$0xff]
    %v35 = vld [vmem:[%s1 + $0x90] sm:$0xff]
    %v36 = vld [vmem:[%s1 + $0x98] sm:$0xff]
    %v37 = vld [vmem:[%s1 + $0xa0] sm:$0xff]
    %v38 = vld [vmem:[%s1 + $0xa8] sm:$0xff]
    %v39 = vld [vmem:[%s1 + $0xb0] sm:$0xff]
    %v40 = vld [vmem:[%s1 + $0xb8] sm:$0xff]
    %v41 = vld [vmem:[%s1 + $0xc0] sm:$0xff]
    %v42 = vld [vmem:[%s1 + $0xc8] sm:$0xff]
    %v43 = vld [vmem:[%s1 + $0xd0] sm:$0xff]
    %v44 = vld [vmem:[%s1 + $0xd8] sm:$0xff]
    %v45 = vld [vmem:[%s1 + $0xe0] sm:$0xff]
    %v46 = vld [vmem:[%s1 + $0xe8] sm:$0xff]
    %v47 = vld [vmem:[%s1 + $0xf0] sm:$0xff]
    %v48 = vld [vmem:[%s1 + $0xf8] sm:$0xff]
    %v49 = vld [vmem:[%s2] sm:$0x3]
    %v51 = vperm.slane %v49, 0
    %v52 = vperm.slane %v49, 1
    %vm55 = vcmask 261120
    %v57 = vsel %vm55, %v15, 0
    %v60 = vsel %vm55, %v16, 0
    %v63 = vsel %vm55, %v17, 0
    %v66 = vsel %vm55, %v18, 0
    %v69 = vsel %vm55, %v19, 0
    %v72 = vsel %vm55, %v20, 0
    %v75 = vsel %vm55, %v21, 0
    %v78 = vsel %vm55, %v22, 0
    %v81 = vsel %vm55, %v23, 0
    %v84 = vsel %vm55, %v24, 0
    %v87 = vsel %vm55, %v25, 0
    %v90 = vsel %vm55, %v26, 0
    %v93 = vsel %vm55, %v27, 0
    %v96 = vsel %vm55, %v28, 0
    %v99 = vsel %vm55, %v29, 0
    %v102 = vsel %vm55, %v30, 0
    %v105 = vsel %vm55, %v31, 0
    %v108 = vsel %vm55, %v32, 0
    %v111 = vsel %vm55, %v33, 0
    %v114 = vsel %vm55, %v34, 0
    %v117 = vsel %vm55, %v35, 0
    %v120 = vsel %vm55, %v36, 0
    %v123 = vsel %vm55, %v37, 0
    %v126 = vsel %vm55, %v38, 0
    %v129 = vsel %vm55, %v39, 0
    %v132 = vsel %vm55, %v40, 0
    %v135 = vsel %vm55, %v41, 0
    %v138 = vsel %vm55, %v42, 0
    %v141 = vsel %vm55, %v43, 0
    %v144 = vsel %vm55, %v44, 0
    %v147 = vsel %vm55, %v45, 0
    %v150 = vsel %vm55, %v46, 0
    %v153 = vsel %vm55, %v47, 0
    %v156 = vsel %vm55, %v48, 0
    %158 = vmatpush.xpose.msra.mxu0 %v108
    %159 = vmatpush.xpose.msra.mxu0 %v105
    %160 = vmatpush.xpose.msra.mxu0 %v102
    %161 = vmatpush.xpose.msra.mxu0 %v99
    %162 = vmatpush.xpose.msra.mxu0 %v96
    %163 = vmatpush.xpose.msra.mxu0 %v93
    %164 = vmatpush.xpose.msra.mxu0 %v90
    %165 = vmatpush.xpose.msra.mxu0 %v87
    %166 = vmatpush.xpose.msra.mxu0 %v84
    %167 = vmatpush.xpose.msra.mxu0 %v81
    %168 = vmatpush.xpose.msra.mxu0 %v78
    %169 = vmatpush.xpose.msra.mxu0 %v75
    %170 = vmatpush.xpose.msra.mxu0 %v72
    %171 = vmatpush.xpose.msra.mxu0 %v69
    %172 = vmatpush.xpose.msra.mxu0 %v66
    %173 = vmatpush.xpose.msra.mxu0 %v63
    %174 = vmatmul.f32.gmra.mxu0 %v57
    %v175 = vpop.f32.mrf.mxu0
    %v176 = vadd.f32 %v51, %v175
    %177 = vmatmul.f32.gmra.mxu0 %v60
    %v178 = vpop.f32.mrf.mxu0
    %v179 = vadd.f32 %v51, %v178
    %180 = vdwg.mxu0
    %181 = vmatpush.xpose.msra.mxu0 %v156
    %182 = vmatpush.xpose.msra.mxu0 %v153
    %183 = vmatpush.xpose.msra.mxu0 %v150
    %184 = vmatpush.xpose.msra.mxu0 %v147
    %185 = vmatpush.xpose.msra.mxu0 %v144
    %186 = vmatpush.xpose.msra.mxu0 %v141
    %187 = vmatpush.xpose.msra.mxu0 %v138
    %188 = vmatpush.xpose.msra.mxu0 %v135
    %189 = vmatpush.xpose.msra.mxu0 %v132
    %190 = vmatpush.xpose.msra.mxu0 %v129
    %191 = vmatpush.xpose.msra.mxu0 %v126
    %192 = vmatpush.xpose.msra.mxu0 %v123
    %193 = vmatpush.xpose.msra.mxu0 %v120
    %194 = vmatpush.xpose.msra.mxu0 %v117
    %195 = vmatpush.xpose.msra.mxu0 %v114
    %196 = vmatpush.xpose.msra.mxu0 %v111
    %197 = vmatmul.f32.gmra.mxu0 %v57
    %v198 = vpop.f32.mrf.mxu0
    %v199 = vadd.f32 %v52, %v198
    %200 = vmatmul.f32.gmra.mxu0 %v60
    %v201 = vpop.f32.mrf.mxu0
    %v202 = vadd.f32 %v52, %v201
    %203 = vdwg.mxu0
    %204 = vst [vmem:[#allocation2] sm:$0xff] %v176
    %205 = vst [vmem:[#allocation2 + $0x8] sm:$0xff] %v199
    %206 = vst [vmem:[#allocation2 + $0x10] sm:$0xff] %v179
    %207 = vst [vmem:[#allocation2 + $0x18] sm:$0xff] %v202
    // Predicated region
    $region14: #{lstm_lm_forward.3} parent=1 // pred_check
      _
    $region15: #{lstm_lm_forward.3} parent=1 // pred_check_branch
      %209 = sbr.rel (0) target = $region17
    $region16: #{lstm_lm_forward.3} parent=1 // pred_region
      %211 = vsyncadd [#allocation3], 0
      %s212 = sshll.u32 [#allocation2], 4
      %s213 = int_to_ptr.vmem [resolvable:$true] %s212
      %s214 = sshll.u32 %s3, 4
      %s215 = int_to_ptr.hbm [resolvable:$true] %s214
      %220 = dma.vmem_to_hbm [thread:$0]  %s213, 512, %s215, [#allocation3], 256, 256, 16
    $region17: #{lstm_lm_forward.3} parent=1 // pred_fallthru
      _
    // Predicated region
    $region18: #{lstm_lm_forward.3} parent=1 // pred_check
      _
    $region19: #{lstm_lm_forward.3} parent=1 // pred_check_branch
      %222 = sbr.rel (0) target = $region21
    $region20: #{lstm_lm_forward.3} parent=1 // pred_region
      %224 = dma.done [#allocation3], 512
    $region21: #{lstm_lm_forward.3} parent=1 // pred_fallthru
      _
    %225 = vsyncpa [#allocation3], 1

// kernel: lstm_lm_forward.2
$region0: #{lstm_lm_forward.2}
  #allocation0 [shape = 'u32[]', space=smem, size = 0x4, offset = 0x4, fixed_abs, tag = 'smem constant byte address 0x4 - core index']
  #allocation1 [shape = 'u32[72,128]{1,0:T(1,128)}', space=vmem, size = 0x9000, scoped, tag = 'internal scratch']
  #allocation2 [shape = 'f32[2,2,32]{2,1,0:T(2,128)}', space=vmem, size = 0x800, scoped, tag = 'scratch operand']
  #allocation3 [shape = 'f32[2,2,32]{2,1,0:T(2,128)}', space=vmem, size = 0x800, scoped, tag = 'scratch operand']
  #allocation4 [shape = 'f32[16,128]{1,0:T(8,128)}', space=vmem, size = 0x2000, scoped, tag = 'scratch operand']
  #allocation5 [shape = 'f32[16,32]{1,0:T(8,128)}', space=vmem, size = 0x2000, scoped, tag = 'scratch operand']
  %s0 = inlined_call_operand.vmem [shape: f32[16,32], index: 0, kind: input, shape index: {}]
  %s1 = inlined_call_operand.vmem [shape: f32[2,32,128], index: 1, kind: input, shape index: {}]
  %s2 = inlined_call_operand.vmem [shape: f32[2,32,128], index: 2, kind: input, shape index: {}]
  %s3 = inlined_call_operand.vmem [shape: f32[2,1,128], index: 3, kind: input, shape index: {}]
  %s4 = inlined_call_operand.vmem [shape: f32[2,2,32], index: 4, kind: input, shape index: {}]
  %s5 = inlined_call_operand.vmem [shape: f32[2,2,32], index: 5, kind: input, shape index: {}]
  %s6 = inlined_call_operand.vmem [shape: f32[2,8,32], index: 6, kind: output, shape index: {0}]
  %s7 = inlined_call_operand.hbm [shape: f32[2,2,32], index: 7, kind: output, shape index: {1}]
  %s8 = inlined_call_operand.hbm [shape: f32[2,2,32], index: 8, kind: output, shape index: {2}]
  %9 = xla_tuple %s6, %s7, %s8
  %s10 = sld [smem:[#allocation0]]
  $region54: #{lstm_lm_forward.2} parent=0
    _
  %s12 = ssub.s32 1, %s10
  %s13 = scalar_select 0, %s12, %s10
  $region1: #{lstm_lm_forward.2} parent=0
    #allocation6 [shape = 'u8[2048]{0}', space=vmem, size = 0x800, scoped, tag = 'output window, operand 1, single buffered']
    #allocation7 [shape = 's32[1]{0}', space=sflag, size = 0x4, scoped, tag = 'scoped memory for lstm_lm_forward.2']
    #allocation8 [shape = 'u8[2048]{0}', space=vmem, size = 0x800, scoped, tag = 'output window, operand 2, single buffered']
    #allocation9 [shape = 's32[1]{0}', space=sflag, size = 0x4, scoped, tag = 'scoped memory for lstm_lm_forward.2']
    %14 = vsyncpa [#allocation7], 0
    %15 = vsyncpa [#allocation9], 0
    // Predicated region
    $region2: #{lstm_lm_forward.2} parent=1 // pred_check
      _
    $region3: #{lstm_lm_forward.2} parent=1 // pred_check_branch
      %17 = sbr.rel (0) target = $region5
    $region4: #{lstm_lm_forward.2} parent=1 // pred_region
      %s18 = sadd.s32 0, 0
      %s19 = smul.u32 2, %s18
      %p20 = scmp.lt.s32.totalorder %s19, 1
      %s21 = scalar_select %p20, %s19, 1
      %s22 = smul.addr %s21, 8
      %s23 = scalar_lea.vmem %s0, %s22
      %s24 = sadd.s32 0, 0
      %s25 = smul.u32 2, %s24
    $region5: #{lstm_lm_forward.2} parent=1 // pred_fallthru
      _
    // Predicated region
    $region6: #{lstm_lm_forward.2} parent=1 // pred_check
      _
    $region7: #{lstm_lm_forward.2} parent=1 // pred_check_branch
      %27 = sbr.rel (0) target = $region9
    $region8: #{lstm_lm_forward.2} parent=1 // pred_region
      _
    $region9: #{lstm_lm_forward.2} parent=1 // pred_fallthru
      _
    // Predicated region
    $region10: #{lstm_lm_forward.2} parent=1 // pred_check
      _
    $region11: #{lstm_lm_forward.2} parent=1 // pred_check_branch
      %29 = sbr.rel (0) target = $region13
    $region12: #{lstm_lm_forward.2} parent=1 // pred_region
      _
    $region13: #{lstm_lm_forward.2} parent=1 // pred_fallthru
      _
    // Predicated region
    $region14: #{lstm_lm_forward.2} parent=1 // pred_check
      _
    $region15: #{lstm_lm_forward.2} parent=1 // pred_check_branch
      %31 = sbr.rel (0) target = $region17
    $region16: #{lstm_lm_forward.2} parent=1 // pred_region
      _
    $region17: #{lstm_lm_forward.2} parent=1 // pred_fallthru
      _
    // Predicated region
    $region18: #{lstm_lm_forward.2} parent=1 // pred_check
      _
    $region19: #{lstm_lm_forward.2} parent=1 // pred_check_branch
      %33 = sbr.rel (0) target = $region21
    $region20: #{lstm_lm_forward.2} parent=1 // pred_region
      _
    $region21: #{lstm_lm_forward.2} parent=1 // pred_fallthru
      _
    // Predicated region
    $region22: #{lstm_lm_forward.2} parent=1 // pred_check
      _
    $region23: #{lstm_lm_forward.2} parent=1 // pred_check_branch
      %35 = sbr.rel (0) target = $region25
    $region24: #{lstm_lm_forward.2} parent=1 // pred_region
      _
    $region25: #{lstm_lm_forward.2} parent=1 // pred_fallthru
      _
    %s36 = sadd.s32 0, 0
    %s37 = smul.u32 2, %s36
    %p38 = scmp.lt.s32.totalorder %s37, 1
    %s39 = scalar_select %p38, %s37, 1
    %s40 = smul.addr %s39, 8
    %s41 = scalar_lea.vmem %s0, %s40
    %s42 = sadd.s32 0, 0
    %s43 = smul.u32 2, %s42
    %p44 = scmp.lt.s32.totalorder %s43, 1
    %s45 = scalar_select %p44, %s43, 1
    %s46 = smul.addr %s45, 8
    %s47 = scalar_lea.vmem %s0, %s46
    %s48 = sadd.s32 0, 0
    %s49 = smul.u32 2, %s48
    %v50 = vlaneseq
    %v51 = vand.u32 %v50, 127
    %vm52 = vcmp.ge.s32.totalorder %v51, 64
    %vm53 = vcmp.lt.s32.totalorder %v51, 96
    %vm54 = vmand %vm52, %vm53
    %v55 = vsel %vm54, 1.0, 0.5
    %v56 = vsel %vm54, 0.0, 0.5
    %p57 = scmp.eq.s32.totalorder 0, 0
    // Predicated region
    $region26: #{lstm_lm_forward.2} parent=1 // pred_check
      %p58 = pneg %p57
    $region27: #{lstm_lm_forward.2} parent=1 // pred_check_branch
      %60 = sbr.rel (%p58) target = $region29
    $region28: #{lstm_lm_forward.2} parent=1 // pred_region
      %v61 = vld [vmem:[%s4] sm:$0x3]
      %v62 = vld [vmem:[%s4 + $0x2] sm:$0x3]
      %vm63 = vcmask 254976
      %64 = vst.msk [vmem:[#allocation2] sm:$0x3] %vm63, %v61
      %65 = vst.msk [vmem:[#allocation2 + $0x2] sm:$0x3] %vm63, %v62
      %v66 = vld [vmem:[%s5] sm:$0x3]
      %v67 = vld [vmem:[%s5 + $0x2] sm:$0x3]
      %68 = vst.msk [vmem:[#allocation3] sm:$0x3] %vm63, %v66
      %69 = vst.msk [vmem:[#allocation3 + $0x2] sm:$0x3] %vm63, %v67
    $region29: #{lstm_lm_forward.2} parent=1 // pred_fallthru
      _
    %v70 = vld [vmem:[%s1] sm:$0xff]
    %v71 = vld [vmem:[%s1 + $0x8] sm:$0xff]
    %v72 = vld [vmem:[%s1 + $0x10] sm:$0xff]
    %v73 = vld [vmem:[%s1 + $0x18] sm:$0xff]
    %v74 = vld [vmem:[%s2] sm:$0xff]
    %v75 = vld [vmem:[%s2 + $0x8] sm:$0xff]
    %v76 = vld [vmem:[%s2 + $0x10] sm:$0xff]
    %v77 = vld [vmem:[%s2 + $0x18] sm:$0xff]
    %v78 = vld [vmem:[%s3] sm:$0x1]
    %v79 = vld [vmem:[%s47] sm:$0xff]
    %v80 = vld [vmem:[%s47 + $0x8] sm:$0xff]
    %v82 = vperm.slane %v78, 0
    %vm84 = vcmask 261120
    %v86 = vsel %vm84, %v79, 0
    %v89 = vsel %vm84, %v80, 0
    %91 = vmatpush.msra.mxu0 0.0
    %92 = vmatpush.msra.mxu0 0.0
    %93 = vmatpush.msra.mxu0 0.0
    %94 = vmatpush.msra.mxu0 0.0
    %95 = vmatpush.msra.mxu0 0.0
    %96 = vmatpush.msra.mxu0 0.0
    %97 = vmatpush.msra.mxu0 0.0
    %98 = vmatpush.msra.mxu0 0.0
    %99 = vmatpush.msra.mxu0 0.0
    %100 = vmatpush.msra.mxu0 0.0
    %101 = vmatpush.msra.mxu0 0.0
    %102 = vmatpush.msra.mxu0 0.0
    %103 = vmatpush.msra.mxu0 %v73
    %104 = vmatpush.msra.mxu0 %v72
    %105 = vmatpush.msra.mxu0 %v71
    %106 = vmatpush.msra.mxu0 %v70
    %107 = vmatmul.f32.gmra.mxu0 %v86
    %v108 = vpop.f32.mrf.mxu0
    %v109 = vadd.f32 %v82, %v108
    %110 = vmatmul.f32.gmra.mxu0 %v89
    %v111 = vpop.f32.mrf.mxu0
    %v112 = vadd.f32 %v82, %v111
    %113 = vdwg.mxu0
    %114 = vst [vmem:[#allocation4] sm:$0xff] %v109
    %115 = vst [vmem:[#allocation4 + $0x8] sm:$0xff] %v112
    %v116 = vld [vmem:[#allocation2] sm:$0x3]
    %v117 = vld [vmem:[#allocation3] sm:$0x3]
    %v118 = vld [vmem:[#allocation4] sm:$0x3]
    %v120 = vsel %vm84, %v116, 0
    %122 = vmatpush.msra.mxu0 0.0
    %123 = vmatpush.msra.mxu0 0.0
    %124 = vmatpush.msra.mxu0 0.0
    %125 = vmatpush.msra.mxu0 0.0
    %126 = vmatpush.msra.mxu0 0.0
    %127 = vmatpush.msra.mxu0 0.0
    %128 = vmatpush.msra.mxu0 0.0
    %129 = vmatpush.msra.mxu0 0.0
    %130 = vmatpush.msra.mxu0 0.0
    %131 = vmatpush.msra.mxu0 0.0
    %132 = vmatpush.msra.mxu0 0.0
    %133 = vmatpush.msra.mxu0 0.0
    %134 = vmatpush.msra.mxu0 %v77
    %135 = vmatpush.msra.mxu0 %v76
    %136 = vmatpush.msra.mxu0 %v75
    %137 = vmatpush.msra.mxu0 %v74
    %138 = vmatmul.f32.gmra.mxu0 %v120
    %v139 = vpop.f32.mrf.mxu0
    %v140 = vadd.f32 0.0, %v139
    %141 = vdwg.mxu0
    %v142 = vadd.f32 %v118, %v140
    %v143 = vmul.f32 %v55, %v142
    %v144 = vtanh.pop %v143
    %v145 = vmul.f32 %v55, %v144
    %v146 = vadd.f32 %v145, %v56
    %148 = vrot.lane.b32.xlu0 %v117, 32
    %v149 = vpop.permute.xlu0 %148
    %v151 = vmul.f32 %v146, %v149
    %153 = vrot.lane.b32.xlu0 %v146, 64
    %v154 = vpop.permute.xlu0 %153
    %v156 = vmul.f32 %v146, %v154
    %158 = vrot.lane.b32.xlu0 %v156, 32
    %v159 = vpop.permute.xlu0 %158
    %v161 = vadd.f32 %v151, %v159
    %v162 = vtanh.pop %v161
    %164 = vrot.lane.b32.xlu0 %v162, 64
    %v165 = vpop.permute.xlu0 %164
    %v167 = vmul.f32 %v146, %v165
    %169 = vrot.lane.b32.xlu0 %v167, 32
    %v170 = vpop.permute.xlu0 %169
    %vm172 = vcmask 254976
    %173 = vst.msk [vmem:[#allocation5] sm:$0x3] %vm172, %v170
    %s174 = scalar_lea.vmem [#allocation4], 2
    %v175 = vld [vmem:[%s174] sm:$0x3]
    %v176 = vsel %vm84, %v170, 0
    %178 = vmatpush.msra.mxu0 0.0
    %179 = vmatpush.msra.mxu0 0.0
    %180 = vmatpush.msra.mxu0 0.0
    %181 = vmatpush.msra.mxu0 0.0
    %182 = vmatpush.msra.mxu0 0.0
    %183 = vmatpush.msra.mxu0 0.0
    %184 = vmatpush.msra.mxu0 0.0
    %185 = vmatpush.msra.mxu0 0.0
    %186 = vmatpush.msra.mxu0 0.0
    %187 = vmatpush.msra.mxu0 0.0
    %188 = vmatpush.msra.mxu0 0.0
    %189 = vmatpush.msra.mxu0 0.0
    %190 = vmatpush.msra.mxu0 %v77
    %191 = vmatpush.msra.mxu0 %v76
    %192 = vmatpush.msra.mxu0 %v75
    %193 = vmatpush.msra.mxu0 %v74
    %194 = vmatmul.f32.gmra.mxu0 %v176
    %v195 = vpop.f32.mrf.mxu0
    %v196 = vadd.f32 0.0, %v195
    %197 = vdwg.mxu0
    %v198 = vadd.f32 %v175, %v196
    %v199 = vmul.f32 %v55, %v198
    %v200 = vtanh.pop %v199
    %v201 = vmul.f32 %v55, %v200
    %v202 = vadd.f32 %v201, %v56
    %v203 = vmul.f32 %v202, %v161
    %205 = vrot.lane.b32.xlu0 %v202, 64
    %v206 = vpop.permute.xlu0 %205
    %v208 = vmul.f32 %v202, %v206
    %210 = vrot.lane.b32.xlu0 %v208, 32
    %v211 = vpop.permute.xlu0 %210
    %v213 = vadd.f32 %v203, %v211
    %v214 = vtanh.pop %v213
    %216 = vrot.lane.b32.xlu0 %v214, 64
    %v217 = vpop.permute.xlu0 %216
    %v219 = vmul.f32 %v202, %v217
    %221 = vrot.lane.b32.xlu0 %v219, 32
    %v222 = vpop.permute.xlu0 %221
    %s224 = scalar_lea.vmem [#allocation5], 2
    %225 = vst.msk [vmem:[%s224] sm:$0x3] %vm172, %v222
    %s226 = scalar_lea.vmem [#allocation4], 4
    %v227 = vld [vmem:[%s226] sm:$0x3]
    %v228 = vsel %vm84, %v222, 0
    %230 = vmatpush.msra.mxu0 0.0
    %231 = vmatpush.msra.mxu0 0.0
    %232 = vmatpush.msra.mxu0 0.0
    %233 = vmatpush.msra.mxu0 0.0
    %234 = vmatpush.msra.mxu0 0.0
    %235 = vmatpush.msra.mxu0 0.0
    %236 = vmatpush.msra.mxu0 0.0
    %237 = vmatpush.msra.mxu0 0.0
    %238 = vmatpush.msra.mxu0 0.0
    %239 = vmatpush.msra.mxu0 0.0
    %240 = vmatpush.msra.mxu0 0.0
    %241 = vmatpush.msra.mxu0 0.0
    %242 = vmatpush.msra.mxu0 %v77
    %243 = vmatpush.msra.mxu0 %v76
    %244 = vmatpush.msra.mxu0 %v75
    %245 = vmatpush.msra.mxu0 %v74
    %246 = vmatmul.f32.gmra.mxu0 %v228
    %v247 = vpop.f32.mrf.mxu0
    %v248 = vadd.f32 0.0, %v247
    %249 = vdwg.mxu0
    %v250 = vadd.f32 %v227, %v248
    %v251 = vmul.f32 %v55, %v250
    %v252 = vtanh.pop %v251
    %v253 = vmul.f32 %v55, %v252
    %v254 = vadd.f32 %v253, %v56
    %v255 = vmul.f32 %v254, %v213
    %257 = vrot.lane.b32.xlu0 %v254, 64
    %v258 = vpop.permute.xlu0 %257
    %v260 = vmul.f32 %v254, %v258
    %262 = vrot.lane.b32.xlu0 %v260, 32
    %v263 = vpop.permute.xlu0 %262
    %v265 = vadd.f32 %v255, %v263
    %v266 = vtanh.pop %v265
    %268 = vrot.lane.b32.xlu0 %v266, 64
    %v269 = vpop.permute.xlu0 %268
    %v271 = vmul.f32 %v254, %v269
    %273 = vrot.lane.b32.xlu0 %v271, 32
    %v274 = vpop.permute.xlu0 %273
    %s276 = scalar_lea.vmem [#allocation5], 4
    %277 = vst.msk [vmem:[%s276] sm:$0x3] %vm172, %v274
    %s278 = scalar_lea.vmem [#allocation4], 6
    %v279 = vld [vmem:[%s278] sm:$0x3]
    %v280 = vsel %vm84, %v274, 0
    %282 = vmatpush.msra.mxu0 0.0
    %283 = vmatpush.msra.mxu0 0.0
    %284 = vmatpush.msra.mxu0 0.0
    %285 = vmatpush.msra.mxu0 0.0
    %286 = vmatpush.msra.mxu0 0.0
    %287 = vmatpush.msra.mxu0 0.0
    %288 = vmatpush.msra.mxu0 0.0
    %289 = vmatpush.msra.mxu0 0.0
    %290 = vmatpush.msra.mxu0 0.0
    %291 = vmatpush.msra.mxu0 0.0
    %292 = vmatpush.msra.mxu0 0.0
    %293 = vmatpush.msra.mxu0 0.0
    %294 = vmatpush.msra.mxu0 %v77
    %295 = vmatpush.msra.mxu0 %v76
    %296 = vmatpush.msra.mxu0 %v75
    %297 = vmatpush.msra.mxu0 %v74
    %298 = vmatmul.f32.gmra.mxu0 %v280
    %v299 = vpop.f32.mrf.mxu0
    %v300 = vadd.f32 0.0, %v299
    %301 = vdwg.mxu0
    %v302 = vadd.f32 %v279, %v300
    %v303 = vmul.f32 %v55, %v302
    %v304 = vtanh.pop %v303
    %v305 = vmul.f32 %v55, %v304
    %v306 = vadd.f32 %v305, %v56
    %v307 = vmul.f32 %v306, %v265
    %309 = vrot.lane.b32.xlu0 %v306, 64
    %v310 = vpop.permute.xlu0 %309
    %v312 = vmul.f32 %v306, %v310
    %314 = vrot.lane.b32.xlu0 %v312, 32
    %v315 = vpop.permute.xlu0 %314
    %v317 = vadd.f32 %v307, %v315
    %v318 = vtanh.pop %v317
    %320 = vrot.lane.b32.xlu0 %v318, 64
    %v321 = vpop.permute.xlu0 %320
    %v323 = vmul.f32 %v306, %v321
    %325 = vrot.lane.b32.xlu0 %v323, 32
    %v326 = vpop.permute.xlu0 %325
    %s328 = scalar_lea.vmem [#allocation5], 6
    %329 = vst.msk [vmem:[%s328] sm:$0x3] %vm172, %v326
    %s330 = scalar_lea.vmem [#allocation4], 8
    %v331 = vld [vmem:[%s330] sm:$0x3]
    %v332 = vsel %vm84, %v326, 0
    %334 = vmatpush.msra.mxu0 0.0
    %335 = vmatpush.msra.mxu0 0.0
    %336 = vmatpush.msra.mxu0 0.0
    %337 = vmatpush.msra.mxu0 0.0
    %338 = vmatpush.msra.mxu0 0.0
    %339 = vmatpush.msra.mxu0 0.0
    %340 = vmatpush.msra.mxu0 0.0
    %341 = vmatpush.msra.mxu0 0.0
    %342 = vmatpush.msra.mxu0 0.0
    %343 = vmatpush.msra.mxu0 0.0
    %344 = vmatpush.msra.mxu0 0.0
    %345 = vmatpush.msra.mxu0 0.0
    %346 = vmatpush.msra.mxu0 %v77
    %347 = vmatpush.msra.mxu0 %v76
    %348 = vmatpush.msra.mxu0 %v75
    %349 = vmatpush.msra.mxu0 %v74
    %350 = vmatmul.f32.gmra.mxu0 %v332
    %v351 = vpop.f32.mrf.mxu0
    %v352 = vadd.f32 0.0, %v351
    %353 = vdwg.mxu0
    %v354 = vadd.f32 %v331, %v352
    %v355 = vmul.f32 %v55, %v354
    %v356 = vtanh.pop %v355
    %v357 = vmul.f32 %v55, %v356
    %v358 = vadd.f32 %v357, %v56
    %v359 = vmul.f32 %v358, %v317
    %361 = vrot.lane.b32.xlu0 %v358, 64
    %v362 = vpop.permute.xlu0 %361
    %v364 = vmul.f32 %v358, %v362
    %366 = vrot.lane.b32.xlu0 %v364, 32
    %v367 = vpop.permute.xlu0 %366
    %v369 = vadd.f32 %v359, %v367
    %v370 = vtanh.pop %v369
    %372 = vrot.lane.b32.xlu0 %v370, 64
    %v373 = vpop.permute.xlu0 %372
    %v375 = vmul.f32 %v358, %v373
    %377 = vrot.lane.b32.xlu0 %v375, 32
    %v378 = vpop.permute.xlu0 %377
    %s380 = scalar_lea.vmem [#allocation5], 8
    %381 = vst.msk [vmem:[%s380] sm:$0x3] %vm172, %v378
    %s382 = scalar_lea.vmem [#allocation4], 10
    %v383 = vld [vmem:[%s382] sm:$0x3]
    %v384 = vsel %vm84, %v378, 0
    %386 = vmatpush.msra.mxu0 0.0
    %387 = vmatpush.msra.mxu0 0.0
    %388 = vmatpush.msra.mxu0 0.0
    %389 = vmatpush.msra.mxu0 0.0
    %390 = vmatpush.msra.mxu0 0.0
    %391 = vmatpush.msra.mxu0 0.0
    %392 = vmatpush.msra.mxu0 0.0
    %393 = vmatpush.msra.mxu0 0.0
    %394 = vmatpush.msra.mxu0 0.0
    %395 = vmatpush.msra.mxu0 0.0
    %396 = vmatpush.msra.mxu0 0.0
    %397 = vmatpush.msra.mxu0 0.0
    %398 = vmatpush.msra.mxu0 %v77
    %399 = vmatpush.msra.mxu0 %v76
    %400 = vmatpush.msra.mxu0 %v75
    %401 = vmatpush.msra.mxu0 %v74
    %402 = vmatmul.f32.gmra.mxu0 %v384
    %v403 = vpop.f32.mrf.mxu0
    %v404 = vadd.f32 0.0, %v403
    %405 = vdwg.mxu0
    %v406 = vadd.f32 %v383, %v404
    %v407 = vmul.f32 %v55, %v406
    %v408 = vtanh.pop %v407
    %v409 = vmul.f32 %v55, %v408
    %v410 = vadd.f32 %v409, %v56
    %v411 = vmul.f32 %v410, %v369
    %413 = vrot.lane.b32.xlu0 %v410, 64
    %v414 = vpop.permute.xlu0 %413
    %v416 = vmul.f32 %v410, %v414
    %418 = vrot.lane.b32.xlu0 %v416, 32
    %v419 = vpop.permute.xlu0 %418
    %v421 = vadd.f32 %v411, %v419
    %v422 = vtanh.pop %v421
    %424 = vrot.lane.b32.xlu0 %v422, 64
    %v425 = vpop.permute.xlu0 %424
    %v427 = vmul.f32 %v410, %v425
    %429 = vrot.lane.b32.xlu0 %v427, 32
    %v430 = vpop.permute.xlu0 %429
    %s432 = scalar_lea.vmem [#allocation5], 10
    %433 = vst.msk [vmem:[%s432] sm:$0x3] %vm172, %v430
    %s434 = scalar_lea.vmem [#allocation4], 12
    %v435 = vld [vmem:[%s434] sm:$0x3]
    %v436 = vsel %vm84, %v430, 0
    %438 = vmatpush.msra.mxu0 0.0
    %439 = vmatpush.msra.mxu0 0.0
    %440 = vmatpush.msra.mxu0 0.0
    %441 = vmatpush.msra.mxu0 0.0
    %442 = vmatpush.msra.mxu0 0.0
    %443 = vmatpush.msra.mxu0 0.0
    %444 = vmatpush.msra.mxu0 0.0
    %445 = vmatpush.msra.mxu0 0.0
    %446 = vmatpush.msra.mxu0 0.0
    %447 = vmatpush.msra.mxu0 0.0
    %448 = vmatpush.msra.mxu0 0.0
    %449 = vmatpush.msra.mxu0 0.0
    %450 = vmatpush.msra.mxu0 %v77
    %451 = vmatpush.msra.mxu0 %v76
    %452 = vmatpush.msra.mxu0 %v75
    %453 = vmatpush.msra.mxu0 %v74
    %454 = vmatmul.f32.gmra.mxu0 %v436
    %v455 = vpop.f32.mrf.mxu0
    %v456 = vadd.f32 0.0, %v455
    %457 = vdwg.mxu0
    %v458 = vadd.f32 %v435, %v456
    %v459 = vmul.f32 %v55, %v458
    %v460 = vtanh.pop %v459
    %v461 = vmul.f32 %v55, %v460
    %v462 = vadd.f32 %v461, %v56
    %v463 = vmul.f32 %v462, %v421
    %465 = vrot.lane.b32.xlu0 %v462, 64
    %v466 = vpop.permute.xlu0 %465
    %v468 = vmul.f32 %v462, %v466
    %470 = vrot.lane.b32.xlu0 %v468, 32
    %v471 = vpop.permute.xlu0 %470
    %v473 = vadd.f32 %v463, %v471
    %v474 = vtanh.pop %v473
    %476 = vrot.lane.b32.xlu0 %v474, 64
    %v477 = vpop.permute.xlu0 %476
    %v479 = vmul.f32 %v462, %v477
    %481 = vrot.lane.b32.xlu0 %v479, 32
    %v482 = vpop.permute.xlu0 %481
    %s484 = scalar_lea.vmem [#allocation5], 12
    %485 = vst.msk [vmem:[%s484] sm:$0x3] %vm172, %v482
    %s486 = scalar_lea.vmem [#allocation4], 14
    %v487 = vld [vmem:[%s486] sm:$0x3]
    %v488 = vsel %vm84, %v482, 0
    %490 = vmatpush.msra.mxu0 0.0
    %491 = vmatpush.msra.mxu0 0.0
    %492 = vmatpush.msra.mxu0 0.0
    %493 = vmatpush.msra.mxu0 0.0
    %494 = vmatpush.msra.mxu0 0.0
    %495 = vmatpush.msra.mxu0 0.0
    %496 = vmatpush.msra.mxu0 0.0
    %497 = vmatpush.msra.mxu0 0.0
    %498 = vmatpush.msra.mxu0 0.0
    %499 = vmatpush.msra.mxu0 0.0
    %500 = vmatpush.msra.mxu0 0.0
    %501 = vmatpush.msra.mxu0 0.0
    %502 = vmatpush.msra.mxu0 %v77
    %503 = vmatpush.msra.mxu0 %v76
    %504 = vmatpush.msra.mxu0 %v75
    %505 = vmatpush.msra.mxu0 %v74
    %506 = vmatmul.f32.gmra.mxu0 %v488
    %v507 = vpop.f32.mrf.mxu0
    %v508 = vadd.f32 0.0, %v507
    %509 = vdwg.mxu0
    %v510 = vadd.f32 %v487, %v508
    %v511 = vmul.f32 %v55, %v510
    %v512 = vtanh.pop %v511
    %v513 = vmul.f32 %v55, %v512
    %v514 = vadd.f32 %v513, %v56
    %v515 = vmul.f32 %v514, %v473
    %517 = vrot.lane.b32.xlu0 %v514, 64
    %v518 = vpop.permute.xlu0 %517
    %v520 = vmul.f32 %v514, %v518
    %522 = vrot.lane.b32.xlu0 %v520, 32
    %v523 = vpop.permute.xlu0 %522
    %v525 = vadd.f32 %v515, %v523
    %v526 = vtanh.pop %v525
    %528 = vrot.lane.b32.xlu0 %v526, 64
    %v529 = vpop.permute.xlu0 %528
    %v531 = vmul.f32 %v514, %v529
    %533 = vrot.lane.b32.xlu0 %v531, 32
    %v534 = vpop.permute.xlu0 %533
    %s536 = scalar_lea.vmem [#allocation5], 14
    %537 = vst.msk [vmem:[%s536] sm:$0x3] %vm172, %v534
    %538 = vst.msk [vmem:[#allocation2] sm:$0x3] %vm172, %v534
    %540 = vrot.lane.b32.xlu0 %v525, 96
    %v541 = vpop.permute.xlu0 %540
    %543 = vst.msk [vmem:[#allocation3] sm:$0x3] %vm172, %v541
    %s544 = scalar_lea.vmem %s1, 32
    %v545 = vld [vmem:[%s544] sm:$0xff]
    %v546 = vld [vmem:[%s544 + $0x8] sm:$0xff]
    %v547 = vld [vmem:[%s544 + $0x10] sm:$0xff]
    %v548 = vld [vmem:[%s544 + $0x18] sm:$0xff]
    %s549 = scalar_lea.vmem %s2, 32
    %v550 = vld [vmem:[%s549] sm:$0xff]
    %v551 = vld [vmem:[%s549 + $0x8] sm:$0xff]
    %v552 = vld [vmem:[%s549 + $0x10] sm:$0xff]
    %v553 = vld [vmem:[%s549 + $0x18] sm:$0xff]
    %s554 = scalar_lea.vmem %s3, 1
    %v555 = vld [vmem:[%s554] sm:$0x1]
    %v556 = vld [vmem:[#allocation5] sm:$0xff]
    %v557 = vld [vmem:[#allocation5 + $0x8] sm:$0xff]
    %v559 = vperm.slane %v555, 0
    %v562 = vsel %vm84, %v556, 0
    %v565 = vsel %vm84, %v557, 0
    %567 = vmatpush.msra.mxu0 0.0
    %568 = vmatpush.msra.mxu0 0.0
    %569 = vmatpush.msra.mxu0 0.0
    %570 = vmatpush.msra.mxu0 0.0
    %571 = vmatpush.msra.mxu0 0.0
    %572 = vmatpush.msra.mxu0 0.0
    %573 = vmatpush.msra.mxu0 0.0
    %574 = vmatpush.msra.mxu0 0.0
    %575 = vmatpush.msra.mxu0 0.0
    %576 = vmatpush.msra.mxu0 0.0
    %577 = vmatpush.msra.mxu0 0.0
    %578 = vmatpush.msra.mxu0 0.0
    %579 = vmatpush.msra.mxu0 %v548
    %580 = vmatpush.msra.mxu0 %v547
    %581 = vmatpush.msra.mxu0 %v546
    %582 = vmatpush.msra.mxu0 %v545
    %583 = vmatmul.f32.gmra.mxu0 %v562
    %v584 = vpop.f32.mrf.mxu0
    %v585 = vadd.f32 %v559, %v584
    %586 = vmatmul.f32.gmra.mxu0 %v565
    %v587 = vpop.f32.mrf.mxu0
    %v588 = vadd.f32 %v559, %v587
    %589 = vdwg.mxu0
    %590 = vst [vmem:[#allocation4] sm:$0xff] %v585
    %591 = vst [vmem:[#allocation4 + $0x8] sm:$0xff] %v588
    %s592 = scalar_lea.vmem [#allocation2], 2
    %v593 = vld [vmem:[%s592] sm:$0x3]
    %s594 = scalar_lea.vmem [#allocation3], 2
    %v595 = vld [vmem:[%s594] sm:$0x3]
    %v596 = vld [vmem:[#allocation4] sm:$0x3]
    %v598 = vsel %vm84, %v593, 0
    %600 = vmatpush.msra.mxu0 0.0
    %601 = vmatpush.msra.mxu0 0.0
    %602 = vmatpush.msra.mxu0 0.0
    %603 = vmatpush.msra.mxu0 0.0
    %604 = vmatpush.msra.mxu0 0.0
    %605 = vmatpush.msra.mxu0 0.0
    %606 = vmatpush.msra.mxu0 0.0
    %607 = vmatpush.msra.mxu0 0.0
    %608 = vmatpush.msra.mxu0 0.0
    %609 = vmatpush.msra.mxu0 0.0
    %610 = vmatpush.msra.mxu0 0.0
    %611 = vmatpush.msra.mxu0 0.0
    %612 = vmatpush.msra.mxu0 %v553
    %613 = vmatpush.msra.mxu0 %v552
    %614 = vmatpush.msra.mxu0 %v551
    %615 = vmatpush.msra.mxu0 %v550
    %616 = vmatmul.f32.gmra.mxu0 %v598
    %v617 = vpop.f32.mrf.mxu0
    %v618 = vadd.f32 0.0, %v617
    %619 = vdwg.mxu0
    %v620 = vadd.f32 %v596, %v618
    %v621 = vmul.f32 %v55, %v620
    %v622 = vtanh.pop %v621
    %v623 = vmul.f32 %v55, %v622
    %v624 = vadd.f32 %v623, %v56
    %626 = vrot.lane.b32.xlu0 %v595, 32
    %v627 = vpop.permute.xlu0 %626
    %v629 = vmul.f32 %v624, %v627
    %631 = vrot.lane.b32.xlu0 %v624, 64
    %v632 = vpop.permute.xlu0 %631
    %v634 = vmul.f32 %v624, %v632
    %636 = vrot.lane.b32.xlu0 %v634, 32
    %v637 = vpop.permute.xlu0 %636
    %v639 = vadd.f32 %v629, %v637
    %v640 = vtanh.pop %v639
    %642 = vrot.lane.b32.xlu0 %v640, 64
    %v643 = vpop.permute.xlu0 %642
    %v645 = vmul.f32 %v624, %v643
    %647 = vrot.lane.b32.xlu0 %v645, 32
    %v648 = vpop.permute.xlu0 %647
    %650 = vst.msk [vmem:[#allocation5] sm:$0x3] %vm172, %v648
    %v651 = vld [vmem:[%s174] sm:$0x3]
    %v652 = vsel %vm84, %v648, 0
    %654 = vmatpush.msra.mxu0 0.0
    %655 = vmatpush.msra.mxu0 0.0
    %656 = vmatpush.msra.mxu0 0.0
    %657 = vmatpush.msra.mxu0 0.0
    %658 = vmatpush.msra.mxu0 0.0
    %659 = vmatpush.msra.mxu0 0.0
    %660 = vmatpush.msra.mxu0 0.0
    %661 = vmatpush.msra.mxu0 0.0
    %662 = vmatpush.msra.mxu0 0.0
    %663 = vmatpush.msra.mxu0 0.0
    %664 = vmatpush.msra.mxu0 0.0
    %665 = vmatpush.msra.mxu0 0.0
    %666 = vmatpush.msra.mxu0 %v553
    %667 = vmatpush.msra.mxu0 %v552
    %668 = vmatpush.msra.mxu0 %v551
    %669 = vmatpush.msra.mxu0 %v550
    %670 = vmatmul.f32.gmra.mxu0 %v652
    %v671 = vpop.f32.mrf.mxu0
    %v672 = vadd.f32 0.0, %v671
    %673 = vdwg.mxu0
    %v674 = vadd.f32 %v651, %v672
    %v675 = vmul.f32 %v55, %v674
    %v676 = vtanh.pop %v675
    %v677 = vmul.f32 %v55, %v676
    %v678 = vadd.f32 %v677, %v56
    %v679 = vmul.f32 %v678, %v639
    %681 = vrot.lane.b32.xlu0 %v678, 64
    %v682 = vpop.permute.xlu0 %681
    %v684 = vmul.f32 %v678, %v682
    %686 = vrot.lane.b32.xlu0 %v684, 32
    %v687 = vpop.permute.xlu0 %686
    %v689 = vadd.f32 %v679, %v687
    %v690 = vtanh.pop %v689
    %692 = vrot.lane.b32.xlu0 %v690, 64
    %v693 = vpop.permute.xlu0 %692
    %v695 = vmul.f32 %v678, %v693
    %697 = vrot.lane.b32.xlu0 %v695, 32
    %v698 = vpop.permute.xlu0 %697
    %700 = vst.msk [vmem:[%s224] sm:$0x3] %vm172, %v698
    %v701 = vld [vmem:[%s226] sm:$0x3]
    %v702 = vsel %vm84, %v698, 0
    %704 = vmatpush.msra.mxu0 0.0
    %705 = vmatpush.msra.mxu0 0.0
    %706 = vmatpush.msra.mxu0 0.0
    %707 = vmatpush.msra.mxu0 0.0
    %708 = vmatpush.msra.mxu0 0.0
    %709 = vmatpush.msra.mxu0 0.0
    %710 = vmatpush.msra.mxu0 0.0
    %711 = vmatpush.msra.mxu0 0.0
    %712 = vmatpush.msra.mxu0 0.0
    %713 = vmatpush.msra.mxu0 0.0
    %714 = vmatpush.msra.mxu0 0.0
    %715 = vmatpush.msra.mxu0 0.0
    %716 = vmatpush.msra.mxu0 %v553
    %717 = vmatpush.msra.mxu0 %v552
    %718 = vmatpush.msra.mxu0 %v551
    %719 = vmatpush.msra.mxu0 %v550
    %720 = vmatmul.f32.gmra.mxu0 %v702
    %v721 = vpop.f32.mrf.mxu0
    %v722 = vadd.f32 0.0, %v721
    %723 = vdwg.mxu0
    %v724 = vadd.f32 %v701, %v722
    %v725 = vmul.f32 %v55, %v724
    %v726 = vtanh.pop %v725
    %v727 = vmul.f32 %v55, %v726
    %v728 = vadd.f32 %v727, %v56
    %v729 = vmul.f32 %v728, %v689
    %731 = vrot.lane.b32.xlu0 %v728, 64
    %v732 = vpop.permute.xlu0 %731
    %v734 = vmul.f32 %v728, %v732
    %736 = vrot.lane.b32.xlu0 %v734, 32
    %v737 = vpop.permute.xlu0 %736
    %v739 = vadd.f32 %v729, %v737
    %v740 = vtanh.pop %v739
    %742 = vrot.lane.b32.xlu0 %v740, 64
    %v743 = vpop.permute.xlu0 %742
    %v745 = vmul.f32 %v728, %v743
    %747 = vrot.lane.b32.xlu0 %v745, 32
    %v748 = vpop.permute.xlu0 %747
    %750 = vst.msk [vmem:[%s276] sm:$0x3] %vm172, %v748
    %v751 = vld [vmem:[%s278] sm:$0x3]
    %v752 = vsel %vm84, %v748, 0
    %754 = vmatpush.msra.mxu0 0.0
    %755 = vmatpush.msra.mxu0 0.0
    %756 = vmatpush.msra.mxu0 0.0
    %757 = vmatpush.msra.mxu0 0.0
    %758 = vmatpush.msra.mxu0 0.0
    %759 = vmatpush.msra.mxu0 0.0
    %760 = vmatpush.msra.mxu0 0.0
    %761 = vmatpush.msra.mxu0 0.0
    %762 = vmatpush.msra.mxu0 0.0
    %763 = vmatpush.msra.mxu0 0.0
    %764 = vmatpush.msra.mxu0 0.0
    %765 = vmatpush.msra.mxu0 0.0
    %766 = vmatpush.msra.mxu0 %v553
    %767 = vmatpush.msra.mxu0 %v552
    %768 = vmatpush.msra.mxu0 %v551
    %769 = vmatpush.msra.mxu0 %v550
    %770 = vmatmul.f32.gmra.mxu0 %v752
    %v771 = vpop.f32.mrf.mxu0
    %v772 = vadd.f32 0.0, %v771
    %773 = vdwg.mxu0
    %v774 = vadd.f32 %v751, %v772
    %v775 = vmul.f32 %v55, %v774
    %v776 = vtanh.pop %v775
    %v777 = vmul.f32 %v55, %v776
    %v778 = vadd.f32 %v777, %v56
    %v779 = vmul.f32 %v778, %v739
    %781 = vrot.lane.b32.xlu0 %v778, 64
    %v782 = vpop.permute.xlu0 %781
    %v784 = vmul.f32 %v778, %v782
    %786 = vrot.lane.b32.xlu0 %v784, 32
    %v787 = vpop.permute.xlu0 %786
    %v789 = vadd.f32 %v779, %v787
    %v790 = vtanh.pop %v789
    %792 = vrot.lane.b32.xlu0 %v790, 64
    %v793 = vpop.permute.xlu0 %792
    %v795 = vmul.f32 %v778, %v793
    %797 = vrot.lane.b32.xlu0 %v795, 32
    %v798 = vpop.permute.xlu0 %797
    %800 = vst.msk [vmem:[%s328] sm:$0x3] %vm172, %v798
    %v801 = vld [vmem:[%s330] sm:$0x3]
    %v802 = vsel %vm84, %v798, 0
    %804 = vmatpush.msra.mxu0 0.0
    %805 = vmatpush.msra.mxu0 0.0
    %806 = vmatpush.msra.mxu0 0.0
    %807 = vmatpush.msra.mxu0 0.0
    %808 = vmatpush.msra.mxu0 0.0
    %809 = vmatpush.msra.mxu0 0.0
    %810 = vmatpush.msra.mxu0 0.0
    %811 = vmatpush.msra.mxu0 0.0
    %812 = vmatpush.msra.mxu0 0.0
    %813 = vmatpush.msra.mxu0 0.0
    %814 = vmatpush.msra.mxu0 0.0
    %815 = vmatpush.msra.mxu0 0.0
    %816 = vmatpush.msra.mxu0 %v553
    %817 = vmatpush.msra.mxu0 %v552
    %818 = vmatpush.msra.mxu0 %v551
    %819 = vmatpush.msra.mxu0 %v550
    %820 = vmatmul.f32.gmra.mxu0 %v802
    %v821 = vpop.f32.mrf.mxu0
    %v822 = vadd.f32 0.0, %v821
    %823 = vdwg.mxu0
    %v824 = vadd.f32 %v801, %v822
    %v825 = vmul.f32 %v55, %v824
    %v826 = vtanh.pop %v825
    %v827 = vmul.f32 %v55, %v826
    %v828 = vadd.f32 %v827, %v56
    %v829 = vmul.f32 %v828, %v789
    %831 = vrot.lane.b32.xlu0 %v828, 64
    %v832 = vpop.permute.xlu0 %831
    %v834 = vmul.f32 %v828, %v832
    %836 = vrot.lane.b32.xlu0 %v834, 32
    %v837 = vpop.permute.xlu0 %836
    %v839 = vadd.f32 %v829, %v837
    %v840 = vtanh.pop %v839
    %842 = vrot.lane.b32.xlu0 %v840, 64
    %v843 = vpop.permute.xlu0 %842
    %v845 = vmul.f32 %v828, %v843
    %847 = vrot.lane.b32.xlu0 %v845, 32
    %v848 = vpop.permute.xlu0 %847
    %850 = vst.msk [vmem:[%s380] sm:$0x3] %vm172, %v848
    %v851 = vld [vmem:[%s382] sm:$0x3]
    %v852 = vsel %vm84, %v848, 0
    %854 = vmatpush.msra.mxu0 0.0
    %855 = vmatpush.msra.mxu0 0.0
    %856 = vmatpush.msra.mxu0 0.0
    %857 = vmatpush.msra.mxu0 0.0
    %858 = vmatpush.msra.mxu0 0.0
    %859 = vmatpush.msra.mxu0 0.0
    %860 = vmatpush.msra.mxu0 0.0
    %861 = vmatpush.msra.mxu0 0.0
    %862 = vmatpush.msra.mxu0 0.0
    %863 = vmatpush.msra.mxu0 0.0
    %864 = vmatpush.msra.mxu0 0.0
    %865 = vmatpush.msra.mxu0 0.0
    %866 = vmatpush.msra.mxu0 %v553
    %867 = vmatpush.msra.mxu0 %v552
    %868 = vmatpush.msra.mxu0 %v551
    %869 = vmatpush.msra.mxu0 %v550
    %870 = vmatmul.f32.gmra.mxu0 %v852
    %v871 = vpop.f32.mrf.mxu0
    %v872 = vadd.f32 0.0, %v871
    %873 = vdwg.mxu0
    %v874 = vadd.f32 %v851, %v872
    %v875 = vmul.f32 %v55, %v874
    %v876 = vtanh.pop %v875
    %v877 = vmul.f32 %v55, %v876
    %v878 = vadd.f32 %v877, %v56
    %v879 = vmul.f32 %v878, %v839
    %881 = vrot.lane.b32.xlu0 %v878, 64
    %v882 = vpop.permute.xlu0 %881
    %v884 = vmul.f32 %v878, %v882
    %886 = vrot.lane.b32.xlu0 %v884, 32
    %v887 = vpop.permute.xlu0 %886
    %v889 = vadd.f32 %v879, %v887
    %v890 = vtanh.pop %v889
    %892 = vrot.lane.b32.xlu0 %v890, 64
    %v893 = vpop.permute.xlu0 %892
    %v895 = vmul.f32 %v878, %v893
    %897 = vrot.lane.b32.xlu0 %v895, 32
    %v898 = vpop.permute.xlu0 %897
    %900 = vst.msk [vmem:[%s432] sm:$0x3] %vm172, %v898
    %v901 = vld [vmem:[%s434] sm:$0x3]
    %v902 = vsel %vm84, %v898, 0
    %904 = vmatpush.msra.mxu0 0.0
    %905 = vmatpush.msra.mxu0 0.0
    %906 = vmatpush.msra.mxu0 0.0
    %907 = vmatpush.msra.mxu0 0.0
    %908 = vmatpush.msra.mxu0 0.0
    %909 = vmatpush.msra.mxu0 0.0
    %910 = vmatpush.msra.mxu0 0.0
    %911 = vmatpush.msra.mxu0 0.0
    %912 = vmatpush.msra.mxu0 0.0
    %913 = vmatpush.msra.mxu0 0.0
    %914 = vmatpush.msra.mxu0 0.0
    %915 = vmatpush.msra.mxu0 0.0
    %916 = vmatpush.msra.mxu0 %v553
    %917 = vmatpush.msra.mxu0 %v552
    %918 = vmatpush.msra.mxu0 %v551
    %919 = vmatpush.msra.mxu0 %v550
    %920 = vmatmul.f32.gmra.mxu0 %v902
    %v921 = vpop.f32.mrf.mxu0
    %v922 = vadd.f32 0.0, %v921
    %923 = vdwg.mxu0
    %v924 = vadd.f32 %v901, %v922
    %v925 = vmul.f32 %v55, %v924
    %v926 = vtanh.pop %v925
    %v927 = vmul.f32 %v55, %v926
    %v928 = vadd.f32 %v927, %v56
    %v929 = vmul.f32 %v928, %v889
    %931 = vrot.lane.b32.xlu0 %v928, 64
    %v932 = vpop.permute.xlu0 %931
    %v934 = vmul.f32 %v928, %v932
    %936 = vrot.lane.b32.xlu0 %v934, 32
    %v937 = vpop.permute.xlu0 %936
    %v939 = vadd.f32 %v929, %v937
    %v940 = vtanh.pop %v939
    %942 = vrot.lane.b32.xlu0 %v940, 64
    %v943 = vpop.permute.xlu0 %942
    %v945 = vmul.f32 %v928, %v943
    %947 = vrot.lane.b32.xlu0 %v945, 32
    %v948 = vpop.permute.xlu0 %947
    %950 = vst.msk [vmem:[%s484] sm:$0x3] %vm172, %v948
    %v951 = vld [vmem:[%s486] sm:$0x3]
    %v952 = vsel %vm84, %v948, 0
    %954 = vmatpush.msra.mxu0 0.0
    %955 = vmatpush.msra.mxu0 0.0
    %956 = vmatpush.msra.mxu0 0.0
    %957 = vmatpush.msra.mxu0 0.0
    %958 = vmatpush.msra.mxu0 0.0
    %959 = vmatpush.msra.mxu0 0.0
    %960 = vmatpush.msra.mxu0 0.0
    %961 = vmatpush.msra.mxu0 0.0
    %962 = vmatpush.msra.mxu0 0.0
    %963 = vmatpush.msra.mxu0 0.0
    %964 = vmatpush.msra.mxu0 0.0
    %965 = vmatpush.msra.mxu0 0.0
    %966 = vmatpush.msra.mxu0 %v553
    %967 = vmatpush.msra.mxu0 %v552
    %968 = vmatpush.msra.mxu0 %v551
    %969 = vmatpush.msra.mxu0 %v550
    %970 = vmatmul.f32.gmra.mxu0 %v952
    %v971 = vpop.f32.mrf.mxu0
    %v972 = vadd.f32 0.0, %v971
    %973 = vdwg.mxu0
    %v974 = vadd.f32 %v951, %v972
    %v975 = vmul.f32 %v55, %v974
    %v976 = vtanh.pop %v975
    %v977 = vmul.f32 %v55, %v976
    %v978 = vadd.f32 %v977, %v56
    %v979 = vmul.f32 %v978, %v939
    %981 = vrot.lane.b32.xlu0 %v978, 64
    %v982 = vpop.permute.xlu0 %981
    %v984 = vmul.f32 %v978, %v982
    %986 = vrot.lane.b32.xlu0 %v984, 32
    %v987 = vpop.permute.xlu0 %986
    %v989 = vadd.f32 %v979, %v987
    %v990 = vtanh.pop %v989
    %992 = vrot.lane.b32.xlu0 %v990, 64
    %v993 = vpop.permute.xlu0 %992
    %v995 = vmul.f32 %v978, %v993
    %997 = vrot.lane.b32.xlu0 %v995, 32
    %v998 = vpop.permute.xlu0 %997
    %1000 = vst.msk [vmem:[%s536] sm:$0x3] %vm172, %v998
    %1001 = vst.msk [vmem:[%s592] sm:$0x3] %vm172, %v998
    %1003 = vrot.lane.b32.xlu0 %v989, 96
    %v1004 = vpop.permute.xlu0 %1003
    %1006 = vst.msk [vmem:[%s594] sm:$0x3] %vm172, %v1004
    %v1007 = vld [vmem:[#allocation5] ss:$2 sm:$0xff]
    %1008 = vst.msk [vmem:[%s6] sm:$0xff] %vm84, %v1007
    %s1009 = scalar_lea.vmem [#allocation5], 1
    %v1010 = vld [vmem:[%s1009] ss:$2 sm:$0xff]
    %s1011 = scalar_lea.vmem %s6, 8
    %1012 = vst.msk [vmem:[%s1011] sm:$0xff] %vm84, %v1010
    %v1013 = vld [vmem:[#allocation2] sm:$0x3]
    %v1014 = vld [vmem:[#allocation2 + $0x2] sm:$0x3]
    %1015 = vst.msk [vmem:[#allocation6] sm:$0x3] %vm172, %v1013
    %1016 = vst.msk [vmem:[#allocation6 + $0x2] sm:$0x3] %vm172, %v1014
    %v1017 = vld [vmem:[#allocation3] sm:$0x3]
    %v1018 = vld [vmem:[#allocation3 + $0x2] sm:$0x3]
    %1019 = vst.msk [vmem:[#allocation8] sm:$0x3] %vm172, %v1017
    %1020 = vst.msk [vmem:[#allocation8 + $0x2] sm:$0x3] %vm172, %v1018
    // Predicated region
    $region30: #{lstm_lm_forward.2} parent=1 // pred_check
      _
    $region31: #{lstm_lm_forward.2} parent=1 // pred_check_branch
      %1022 = sbr.rel (0) target = $region33
    $region32: #{lstm_lm_forward.2} parent=1 // pred_region
      _
    $region33: #{lstm_lm_forward.2} parent=1 // pred_fallthru
      _
    // Predicated region
    $region34: #{lstm_lm_forward.2} parent=1 // pred_check
      _
    $region35: #{lstm_lm_forward.2} parent=1 // pred_check_branch
      %1024 = sbr.rel (0) target = $region37
    $region36: #{lstm_lm_forward.2} parent=1 // pred_region
      %1026 = vsyncadd [#allocation7], 0
      %s1027 = sshll.u32 [#allocation6], 4
      %s1028 = int_to_ptr.vmem [resolvable:$true] %s1027
      %s1029 = sshll.u32 %s7, 4
      %s1030 = int_to_ptr.hbm [resolvable:$true] %s1029
      %1035 = dma.vmem_to_hbm [thread:$0]  %s1028, 64, %s1030, [#allocation7], 32, 32, 2
    $region37: #{lstm_lm_forward.2} parent=1 // pred_fallthru
      _
    // Predicated region
    $region38: #{lstm_lm_forward.2} parent=1 // pred_check
      _
    $region39: #{lstm_lm_forward.2} parent=1 // pred_check_branch
      %1037 = sbr.rel (0) target = $region41
    $region40: #{lstm_lm_forward.2} parent=1 // pred_region
      %1039 = vsyncadd [#allocation9], 0
      %s1040 = sshll.u32 [#allocation8], 4
      %s1041 = int_to_ptr.vmem [resolvable:$true] %s1040
      %s1042 = sshll.u32 %s8, 4
      %s1043 = int_to_ptr.hbm [resolvable:$true] %s1042
      %1048 = dma.vmem_to_hbm [thread:$0]  %s1041, 64, %s1043, [#allocation9], 32, 32, 2
    $region41: #{lstm_lm_forward.2} parent=1 // pred_fallthru
      _
    // Predicated region
    $region42: #{lstm_lm_forward.2} parent=1 // pred_check
      _
    $region43: #{lstm_lm_forward.2} parent=1 // pred_check_branch
      %1050 = sbr.rel (0) target = $region45
    $region44: #{lstm_lm_forward.2} parent=1 // pred_region
      _
    $region45: #{lstm_lm_forward.2} parent=1 // pred_fallthru
      _
    // Predicated region
    $region46: #{lstm_lm_forward.2} parent=1 // pred_check
      _
    $region47: #{lstm_lm_forward.2} parent=1 // pred_check_branch
      %1052 = sbr.rel (0) target = $region49
    $region48: #{lstm_lm_forward.2} parent=1 // pred_region
      %1054 = dma.done [#allocation7], 64
    $region49: #{lstm_lm_forward.2} parent=1 // pred_fallthru
      _
    // Predicated region
    $region50: #{lstm_lm_forward.2} parent=1 // pred_check
      _
    $region51: #{lstm_lm_forward.2} parent=1 // pred_check_branch
      %1056 = sbr.rel (0) target = $region53
    $region52: #{lstm_lm_forward.2} parent=1 // pred_region
      %1058 = dma.done [#allocation9], 64
    $region53: #{lstm_lm_forward.2} parent=1 // pred_fallthru
      _
    %1059 = vsyncpa [#allocation7], 1
    %1060 = vsyncpa [#allocation9], 1

</llo_original>
